<compile_context>
chip_gen: v7x
topology: tpu7x:2x2x1
jax: 0.10.0
libtpu: 0.0.40
codegen_flags: <defaults>
</compile_context>

<pallas_src>
import math

import jax
import jax.numpy as jnp
from jax import lax
from jax.experimental import pallas as pl
from jax.experimental.pallas import tpu as pltpu

# ----------------------------- config ---------------------------------------
BATCH = 2
SEQ = 8
HIDDEN = 32
NUM_HEADS = 4
HEAD_DIM = HIDDEN // NUM_HEADS           # 8
HALF = HEAD_DIM // 2                     # 4
INTERMEDIATE = 64
RMS_EPS = 1e-6
ROPE_THETA = 10000.0
DTYPE = jnp.float32
MXU_DTYPE = jnp.bfloat16                 # matmul operand dtype (f32 accumulation)

TOKENS = BATCH * SEQ                     # 16: batch flattened into the sublane axis
LANES = 128                              # lane width every kernel array is padded to
NKEYS = NUM_HEADS * TOKENS               # 64: score columns = (head, key-token)

assert HIDDEN == NUM_HEADS * HEAD_DIM
assert HEAD_DIM % 2 == 0
assert HIDDEN <= LANES
assert NUM_HEADS * HALF <= LANES // 2    # spread head layout fits in half the lanes
assert 2 * INTERMEDIATE == LANES         # fused [gate|up] matmul exactly fills 128 lanes
assert NKEYS <= LANES


# --------------------------- Pallas kernel ----------------------------------
def llama_decoder_layer_kernel(
    x_ref,      # (T, 128)   f32  hidden states, natural lanes [:HIDDEN], zero pad
    cos_ref,    # (T, 128)   f32  RoPE cos, spread head layout (zeros in unused lanes)
    sin_ref,    # (T, 128)   f32  RoPE sin, spread layout, rotate_half sign folded in
    wqkv_ref,   # (128, 384) bf16 fused [q|k|v]: natural-in rows, spread-head-out cols
    wo_ref,     # (128, 128) bf16 spread-head-in rows, natural-out cols (zero elsewhere)
    wgu_ref,    # (128, 128) bf16 [gate | up]
    wd_ref,     # (128, 128) bf16 down; zero rows >= INTERMEDIATE kill the rolled half
    ln1_ref,    # (1, 128)   f32
    ln2_ref,    # (1, 128)   f32
    kmt_ref,    # (128, 64)  f32  head mask for transposed K: [l, n*T+s] = (head(l)==n)
    vmask_ref,  # (64, 128)  f32  head mask for tiled V:      [n*T+s, l] = (head(l)==n)
    seg_ref,    # (64, 64)   f32  block-diagonal ones: per-head segment-sum matrix
    bias_ref,   # (16, 64)   f32  causal + same-sequence additive bias (tiled over heads)
    o_ref,      # (T, 128)   f32  output
):
    f32 = jnp.float32
    x = x_ref[...]

    # ---- input RMSNorm (pad lanes are zero; divide by the true hidden size) ----
    var1 = jnp.sum(x * x, axis=-1, keepdims=True) * (1.0 / HIDDEN)
    xn = x * lax.rsqrt(var1 + RMS_EPS) * ln1_ref[...]

    # ---- fused QKV projection: ONE (T,128)x(128,384) MXU pass, bf16 operands ----
    qkv = jnp.dot(xn.astype(MXU_DTYPE), wqkv_ref[...], preferred_element_type=f32)
    q = qkv[:, 0 * LANES:1 * LANES]          # lane-aligned static slices (free)
    k = qkv[:, 1 * LANES:2 * LANES]
    v = qkv[:, 2 * LANES:3 * LANES]

    # ---- RoPE: rotate_half == one roll by LANES//2 in the spread layout ----
    cos = cos_ref[...]
    sin = sin_ref[...]
    q = q * cos + pltpu.roll(q, LANES // 2, axis=1) * sin
    k = k * cos + pltpu.roll(k, LANES // 2, axis=1) * sin
    q = q * (1.0 / math.sqrt(HEAD_DIM))

    # ---- attention scores for ALL heads with ONE dense (K=128, N=NH*T) matmul:
    #      RHS[l, n*T + s] = k[s, l] * (head(l) == n)   (K pre-transposed once) ----
    kT = k.T                                                        # (128, T)
    khT = jnp.concatenate([kT] * NUM_HEADS, axis=1) * kmt_ref[...]  # (128, NH*T)
    scores = jnp.dot(q.astype(MXU_DTYPE), khT.astype(MXU_DTYPE),
                     preferred_element_type=f32)                    # (T, NH*T)
    scores = scores + bias_ref[...]                                 # f32 bias: -1e9 safe

    # ---- segmented softmax, all in f32 and all 2-D:
    #      shift by the global row max (the per-segment shift cancels in the ratio),
    #      per-head denominators broadcast back via one block-diag-ones matmul ----
    m = jnp.max(scores, axis=-1, keepdims=True)
    p = jnp.exp(scores - m)                                         # (T, NH*T)
    denom = jnp.dot(p, seg_ref[...], preferred_element_type=f32)    # per-segment sums
    p = p * pl.reciprocal(denom, approx=True)

    # ---- PV: ONE dense (K=NH*T, N=128) matmul; masked V merges heads into
    #      disjoint spread lanes (no cross-sublane head reduction needed) ----
    vh = jnp.concatenate([v] * NUM_HEADS, axis=0) * vmask_ref[...]  # (NH*T, 128)
    attn = jnp.dot(p.astype(MXU_DTYPE), vh.astype(MXU_DTYPE),
                   preferred_element_type=f32)                      # (T, 128)

    # ---- o_proj + residual (wo maps spread-head lanes back to natural lanes) ----
    h1 = x + jnp.dot(attn.astype(MXU_DTYPE), wo_ref[...], preferred_element_type=f32)

    # ---- post-attention RMSNorm ----
    var2 = jnp.sum(h1 * h1, axis=-1, keepdims=True) * (1.0 / HIDDEN)
    hn = h1 * lax.rsqrt(var2 + RMS_EPS) * ln2_ref[...]

    # ---- SwiGLU MLP: fused [gate|up] matmul, EUP tanh-form sigmoid, roll-aligned up ----
    gu = jnp.dot(hn.astype(MXU_DTYPE), wgu_ref[...], preferred_element_type=f32)
    silu = gu * (0.5 * jnp.tanh(0.5 * gu) + 0.5)                    # stable sigmoid
    act = silu * pltpu.roll(gu, INTERMEDIATE, axis=1)               # valid in lanes [:I]
    d = jnp.dot(act.astype(MXU_DTYPE), wd_ref[...], preferred_element_type=f32)

    # ---- residual + lane-dense (unmasked) store ----
    o_ref[...] = h1 + d


# ------------------------- one-time preparation ------------------------------
def _head_permutation():
    """Natural head-dim column index for each compact-permuted position."""
    first = [n * HEAD_DIM + j for n in range(NUM_HEADS) for j in range(HALF)]
    second = [n * HEAD_DIM + HALF + j for n in range(NUM_HEADS) for j in range(HALF)]
    return jnp.asarray(first + second, dtype=jnp.int32)


def _spread_lane_index():
    """Lane slots of the permuted head dims inside the 128-lane spread layout."""
    first = list(range(NUM_HEADS * HALF))                    # 0 .. 15
    second = [LANES // 2 + i for i in first]                 # 64 .. 79
    return jnp.asarray(first + second, dtype=jnp.int32)


def prepare_decoder_params(params):
    """One-time weight + constant prep (hoisted out of the per-call path).

    Returns bf16 128-lane weight slabs plus the small constant mask / segment /
    bias tables the kernel consumes.  Zero-pad invariants (x pad lanes, wo cols
    >= H, wd rows >= INTERMEDIATE) are preserved exactly."""
    f32 = jnp.float32
    perm = _head_permutation()
    lanes = _spread_lane_index()

    def spread_cols(w):            # (H, H) -> (H, 128), head-permuted + spread
        return jnp.zeros((w.shape[0], LANES), f32).at[:, lanes].set(
            w[:, perm].astype(f32))

    def pad_rows(w):               # (r, c) -> (128, c)
        return jnp.pad(w, ((0, LANES - w.shape[0]), (0, 0)))

    wq = pad_rows(spread_cols(params["wq"]))
    wk = pad_rows(spread_cols(params["wk"]))
    wv = pad_rows(spread_cols(params["wv"]))
    wqkv = jnp.concatenate([wq, wk, wv], axis=1).astype(MXU_DTYPE)      # (128, 384)

    wo = jnp.zeros((LANES, LANES), f32).at[lanes, :].set(
        jnp.pad(params["wo"].astype(f32)[perm, :],
                ((0, 0), (0, LANES - HIDDEN)))).astype(MXU_DTYPE)

    wgu = pad_rows(jnp.concatenate([params["wg"], params["wu"]],
                                   axis=1).astype(f32)).astype(MXU_DTYPE)
    wd = jnp.pad(params["wd"].astype(f32),
                 ((0, LANES - INTERMEDIATE), (0, LANES - HIDDEN))).astype(MXU_DTYPE)

    ln1 = jnp.pad(params["ln1"].astype(f32), ((0, 0), (0, LANES - HIDDEN)))
    ln2 = jnp.pad(params["ln2"].astype(f32), ((0, 0), (0, LANES - HIDDEN)))

    # --- constant head masks, segment-sum matrix and causal bias (tiny) ---
    lane_idx = jnp.arange(LANES)
    head_of_lane = (lane_idx % (LANES // 2)) // HALF
    head_of_lane = jnp.where(head_of_lane < NUM_HEADS, head_of_lane, -1)
    col_head = jnp.arange(NKEYS) // TOKENS

    kmt = (head_of_lane[:, None] == col_head[None, :]).astype(f32)      # (128, 64)
    vmask = kmt.T                                                        # (64, 128)
    seg = (col_head[:, None] == col_head[None, :]).astype(f32)           # (64, 64)

    tq = jnp.arange(TOKENS)[:, None]
    tk = jnp.arange(NKEYS)[None, :] % TOKENS
    visible = jnp.logical_and(tq // SEQ == tk // SEQ, tq >= tk)
    bias = jnp.where(visible, 0.0, -1e9).astype(f32)                     # (16, 64)

    return dict(wqkv=wqkv, wo=wo, wgu=wgu, wd=wd, ln1=ln1, ln2=ln2,
                kmt=kmt, vmask=vmask, seg=seg, bias=bias)


def prepare_rope(cos, sin):
    """One-time RoPE table prep: spread head layout, rotate_half sign folded into sin."""
    f32 = jnp.float32
    B, S, D = cos.shape
    T = B * S
    lanes = _spread_lane_index()
    d_idx = jnp.asarray([j for _ in range(NUM_HEADS) for j in range(HALF)]
                        + [HALF + j for _ in range(NUM_HEADS) for j in range(HALF)],
                        dtype=jnp.int32)
    sign = jnp.concatenate([jnp.full((HIDDEN // 2,), -1.0, f32),
                            jnp.full((HIDDEN // 2,), 1.0, f32)])
    cos_c = cos.reshape(T, D)[:, d_idx].astype(f32)
    sin_c = sin.reshape(T, D)[:, d_idx].astype(f32) * sign[None, :]
    cos_f = jnp.zeros((T, LANES), f32).at[:, lanes].set(cos_c)
    sin_f = jnp.zeros((T, LANES), f32).at[:, lanes].set(sin_c)
    return cos_f, sin_f


# ------------------------------ per-call wrapper ------------------------------
_COST = pl.CostEstimate(
    flops=2 * TOKENS * (LANES * 3 * LANES + LANES * NKEYS + NKEYS * NKEYS
                        + NKEYS * LANES + 3 * LANES * LANES),
    transcendentals=TOKENS * (2 * NKEYS + LANES) + 4 * TOKENS,
    bytes_accessed=(4 * 4 * TOKENS * LANES                       # x, cos, sin, out (f32)
                    + 2 * (3 * LANES * LANES + 3 * LANES * LANES)  # bf16 weight slabs
                    + 4 * (2 * LANES + 2 * LANES * NKEYS
                           + NKEYS * NKEYS + TOKENS * NKEYS)),    # ln + mask constants
)


@jax.jit
def llama_decoder_layer(hidden_states, cos_f, sin_f, prep):
    """hidden_states: (B, S, H); cos_f/sin_f from prepare_rope; prep from
    prepare_decoder_params (both computed once, outside the per-call path)."""
    B, S, H = hidden_states.shape
    T = B * S

    # The only per-call prep: flatten batch into sublanes, zero-pad lanes to 128.
    x_pad = jnp.pad(hidden_states.reshape(T, H).astype(jnp.float32),
                    ((0, 0), (0, LANES - H)))

    vmem = pl.BlockSpec(memory_space=pltpu.MemorySpace.VMEM)
    out_padded = pl.pallas_call(
        llama_decoder_layer_kernel,
        out_shape=jax.ShapeDtypeStruct((T, LANES), jnp.float32),
        in_specs=[vmem] * 13,
        out_specs=vmem,
        cost_estimate=_COST,
    )(x_pad, cos_f, sin_f, prep["wqkv"], prep["wo"], prep["wgu"], prep["wd"],
      prep["ln1"], prep["ln2"], prep["kmt"], prep["vmask"], prep["seg"], prep["bias"])

    # TODO(synk): when stacking layers, keep the padded (T, 128) activation layout
    # between layers (and consider input_output_aliases) and de-pad once at the end.
    return out_padded[:, :H].reshape(B, S, H)


# --------------------------- pure-JAX reference -------------------------------
def reference(hidden_states, cos, sin, p):
    def rmsnorm(x, w):
        var = jnp.mean(x * x, axis=-1, keepdims=True)
        return x * lax.rsqrt(var + RMS_EPS) * w

    def rot_half(t):
        h = HEAD_DIM // 2
        return jnp.concatenate([-t[..., h:], t[..., :h]], axis=-1)

    B, S, H = hidden_states.shape
    x = hidden_states
    xn = rmsnorm(x, p["ln1"][0])
    q = (xn @ p["wq"]).reshape(B, S, NUM_HEADS, HEAD_DIM).transpose(0, 2, 1, 3)
    k = (xn @ p["wk"]).reshape(B, S, NUM_HEADS, HEAD_DIM).transpose(0, 2, 1, 3)
    v = (xn @ p["wv"]).reshape(B, S, NUM_HEADS, HEAD_DIM).transpose(0, 2, 1, 3)
    c = cos[:, None, :, :]
    s = sin[:, None, :, :]
    q = q * c + rot_half(q) * s
    k = k * c + rot_half(k) * s
    scores = jnp.einsum("bhqd,bhkd->bhqk", q, k) / math.sqrt(HEAD_DIM)
    mask = jnp.where(jnp.tril(jnp.ones((S, S), bool)), 0.0, -1e9)
    scores = scores + mask
    probs = jax.nn.softmax(scores, axis=-1)
    o = jnp.einsum("bhqk,bhkd->bhqd", probs, v)
    o = o.transpose(0, 2, 1, 3).reshape(B, S, H) @ p["wo"]
    h1 = x + o
    hn = rmsnorm(h1, p["ln2"][0])
    mlp = (jax.nn.silu(hn @ p["wg"]) * (hn @ p["wu"])) @ p["wd"]
    return h1 + mlp


# ------------------------------- main -----------------------------------------
if __name__ == "__main__":
    key = jax.random.PRNGKey(0)
    ks = jax.random.split(key, 10)
    scale = 0.05
    params = {
        "wq": jax.random.normal(ks[0], (HIDDEN, HIDDEN), DTYPE) * scale,
        "wk": jax.random.normal(ks[1], (HIDDEN, HIDDEN), DTYPE) * scale,
        "wv": jax.random.normal(ks[2], (HIDDEN, HIDDEN), DTYPE) * scale,
        "wo": jax.random.normal(ks[3], (HIDDEN, HIDDEN), DTYPE) * scale,
        "wg": jax.random.normal(ks[4], (HIDDEN, INTERMEDIATE), DTYPE) * scale,
        "wu": jax.random.normal(ks[5], (HIDDEN, INTERMEDIATE), DTYPE) * scale,
        "wd": jax.random.normal(ks[6], (INTERMEDIATE, HIDDEN), DTYPE) * scale,
        "ln1": jnp.ones((1, HIDDEN), DTYPE),
        "ln2": jnp.ones((1, HIDDEN), DTYPE),
    }

    hidden_states = jax.random.normal(ks[7], (BATCH, SEQ, HIDDEN), DTYPE)

    # RoPE position embeddings (cos, sin) of shape (B, S, head_dim), HF convention.
    pos = jnp.arange(SEQ, dtype=jnp.float32)
    inv_freq = 1.0 / (ROPE_THETA ** (jnp.arange(0, HEAD_DIM, 2, dtype=jnp.float32) / HEAD_DIM))
    freqs = pos[:, None] * inv_freq[None, :]
    emb = jnp.concatenate([freqs, freqs], axis=-1)
    cos = jnp.broadcast_to(jnp.cos(emb), (BATCH, SEQ, HEAD_DIM)).astype(DTYPE)
    sin = jnp.broadcast_to(jnp.sin(emb), (BATCH, SEQ, HEAD_DIM)).astype(DTYPE)

    # One-time prep (hoisted out of the per-call path, per the perf review).
    prep = prepare_decoder_params(params)
    cos_f, sin_f = prepare_rope(cos, sin)

    out = llama_decoder_layer(hidden_states, cos_f, sin_f, prep)
    out = jax.block_until_ready(out)

    ref = reference(hidden_states, cos, sin, params)
    assert out.shape == (BATCH, SEQ, HIDDEN)
    err = float(jnp.max(jnp.abs(out - ref)))
    # 2e-2 tolerance: deviations come from bf16 MXU operands (f32 accumulation),
    # the EUP approximate reciprocal in softmax, and the tanh-form sigmoid in silu;
    # residual/norm/softmax paths stay f32 so observed error is typically ~1e-3.
    assert jnp.allclose(out, ref, atol=2e-2, rtol=2e-2), err

    print("KERNEL_OK")
</pallas_src>

<mosaic_0001>
module attributes {stable_mosaic.version = 11 : i64} {
  func.func @llama_decoder_layer_kernel(%arg0: memref<16x128xf32, #tpu.memory_space<vmem>>, %arg1: memref<16x128xf32, #tpu.memory_space<vmem>>, %arg2: memref<16x128xf32, #tpu.memory_space<vmem>>, %arg3: memref<128x384xbf16, #tpu.memory_space<vmem>>, %arg4: memref<128x128xbf16, #tpu.memory_space<vmem>>, %arg5: memref<128x128xbf16, #tpu.memory_space<vmem>>, %arg6: memref<128x128xbf16, #tpu.memory_space<vmem>>, %arg7: memref<1x128xf32, #tpu.memory_space<vmem>>, %arg8: memref<1x128xf32, #tpu.memory_space<vmem>>, %arg9: memref<128x64xf32, #tpu.memory_space<vmem>>, %arg10: memref<64x128xf32, #tpu.memory_space<vmem>>, %arg11: memref<64x64xf32, #tpu.memory_space<vmem>>, %arg12: memref<16x64xf32, #tpu.memory_space<vmem>>, %arg13: memref<16x128xf32, #tpu.memory_space<vmem>>) attributes {dimension_semantics = [], scalar_prefetch = 0 : i64, scratch_operands = 0 : i64, tpu.core_type = #tpu.core_type<tc>} {
    %c0 = arith.constant 0 : index
    %c0_0 = arith.constant 0 : index
    %0 = vector.load %arg0[%c0, %c0_0] : memref<16x128xf32, #tpu.memory_space<vmem>>, vector<16x128xf32>
    %1 = arith.mulf %0, %0 : vector<16x128xf32>
    %cst = arith.constant dense<0.000000e+00> : vector<16xf32>
    %2 = vector.multi_reduction <add>, %1, %cst [1] : vector<16x128xf32> to vector<16xf32>
    %3 = vector.shape_cast %2 : vector<16xf32> to vector<16x1xf32>
    %cst_1 = arith.constant 3.125000e-02 : f32
    %4 = vector.broadcast %cst_1 : f32 to vector<16x1xf32>
    %5 = arith.mulf %3, %4 : vector<16x1xf32>
    %cst_2 = arith.constant 9.99999997E-7 : f32
    %6 = vector.broadcast %cst_2 : f32 to vector<16x1xf32>
    %7 = arith.addf %5, %6 : vector<16x1xf32>
    %8 = math.rsqrt %7 : vector<16x1xf32>
    %9 = vector.broadcast %8 : vector<16x1xf32> to vector<16x128xf32>
    %10 = arith.mulf %0, %9 : vector<16x128xf32>
    %c0_3 = arith.constant 0 : index
    %c0_4 = arith.constant 0 : index
    %11 = vector.load %arg7[%c0_3, %c0_4] : memref<1x128xf32, #tpu.memory_space<vmem>>, vector<1x128xf32>
    %12 = vector.broadcast %11 : vector<1x128xf32> to vector<16x128xf32>
    %13 = arith.mulf %10, %12 : vector<16x128xf32>
    %14 = arith.truncf %13 : vector<16x128xf32> to vector<16x128xbf16>
    %c0_5 = arith.constant 0 : index
    %c0_6 = arith.constant 0 : index
    %15 = vector.load %arg3[%c0_5, %c0_6] : memref<128x384xbf16, #tpu.memory_space<vmem>>, vector<128x384xbf16>
    %cst_7 = arith.constant dense<0.000000e+00> : vector<16x384xf32>
    %16 = tpu.matmul %14, %15, %cst_7 {dimension_numbers = #tpu.dot_dimension_numbers<[1], [0], [0], [1], [0, 0, 1, 1], [], []>} : vector<16x128xbf16>, vector<128x384xbf16>, vector<16x384xf32> -> vector<16x384xf32>
    %17 = vector.extract_strided_slice %16 {offsets = [0, 0], sizes = [16, 128], strides = [1, 1]} : vector<16x384xf32> to vector<16x128xf32>
    %18 = vector.extract_strided_slice %16 {offsets = [0, 128], sizes = [16, 128], strides = [1, 1]} : vector<16x384xf32> to vector<16x128xf32>
    %19 = vector.extract_strided_slice %16 {offsets = [0, 256], sizes = [16, 128], strides = [1, 1]} : vector<16x384xf32> to vector<16x128xf32>
    %c0_8 = arith.constant 0 : index
    %c0_9 = arith.constant 0 : index
    %20 = vector.load %arg1[%c0_8, %c0_9] : memref<16x128xf32, #tpu.memory_space<vmem>>, vector<16x128xf32>
    %c0_10 = arith.constant 0 : index
    %c0_11 = arith.constant 0 : index
    %21 = vector.load %arg2[%c0_10, %c0_11] : memref<16x128xf32, #tpu.memory_space<vmem>>, vector<16x128xf32>
    %22 = arith.mulf %17, %20 : vector<16x128xf32>
    %c64_i32 = arith.constant 64 : i32
    %23 = tpu.dynamic_rotate %17 by %c64_i32 dim 1 : vector<16x128xf32>, i32 -> vector<16x128xf32>
    %24 = arith.mulf %23, %21 : vector<16x128xf32>
    %25 = arith.addf %22, %24 : vector<16x128xf32>
    %26 = arith.mulf %18, %20 : vector<16x128xf32>
    %c64_i32_12 = arith.constant 64 : i32
    %27 = tpu.dynamic_rotate %18 by %c64_i32_12 dim 1 : vector<16x128xf32>, i32 -> vector<16x128xf32>
    %28 = arith.mulf %27, %21 : vector<16x128xf32>
    %29 = arith.addf %26, %28 : vector<16x128xf32>
    %cst_13 = arith.constant 0.353553385 : f32
    %30 = vector.broadcast %cst_13 : f32 to vector<16x128xf32>
    %31 = arith.mulf %25, %30 : vector<16x128xf32>
    %32 = tpu.transpose %29, [1, 0] : vector<16x128xf32> -> vector<128x16xf32>
    %33 = tpu.concatenate %32, %32, %32, %32 in 1 : vector<128x16xf32>, vector<128x16xf32>, vector<128x16xf32>, vector<128x16xf32> -> vector<128x64xf32>
    %c0_14 = arith.constant 0 : index
    %c0_15 = arith.constant 0 : index
    %34 = vector.load %arg9[%c0_14, %c0_15] : memref<128x64xf32, #tpu.memory_space<vmem>>, vector<128x64xf32>
    %35 = arith.mulf %33, %34 : vector<128x64xf32>
    %36 = arith.truncf %31 : vector<16x128xf32> to vector<16x128xbf16>
    %37 = arith.truncf %35 : vector<128x64xf32> to vector<128x64xbf16>
    %cst_16 = arith.constant dense<0.000000e+00> : vector<16x64xf32>
    %38 = tpu.matmul %36, %37, %cst_16 {dimension_numbers = #tpu.dot_dimension_numbers<[1], [0], [0], [1], [0, 0, 1, 1], [], []>} : vector<16x128xbf16>, vector<128x64xbf16>, vector<16x64xf32> -> vector<16x64xf32>
    %c0_17 = arith.constant 0 : index
    %c0_18 = arith.constant 0 : index
    %39 = vector.load %arg12[%c0_17, %c0_18] : memref<16x64xf32, #tpu.memory_space<vmem>>, vector<16x64xf32>
    %40 = arith.addf %38, %39 : vector<16x64xf32>
    %cst_19 = arith.constant dense<0xFF800000> : vector<16xf32>
    %41 = vector.multi_reduction <maximumf>, %40, %cst_19 [1] : vector<16x64xf32> to vector<16xf32>
    %42 = vector.shape_cast %41 : vector<16xf32> to vector<16x1xf32>
    %43 = vector.broadcast %42 : vector<16x1xf32> to vector<16x64xf32>
    %44 = arith.subf %40, %43 : vector<16x64xf32>
    %45 = math.exp %44 : vector<16x64xf32>
    %c0_20 = arith.constant 0 : index
    %c0_21 = arith.constant 0 : index
    %46 = vector.load %arg11[%c0_20, %c0_21] : memref<64x64xf32, #tpu.memory_space<vmem>>, vector<64x64xf32>
    %cst_22 = arith.constant dense<0.000000e+00> : vector<16x64xf32>
    %47 = tpu.matmul %45, %46, %cst_22 {dimension_numbers = #tpu.dot_dimension_numbers<[1], [0], [0], [1], [0, 0, 1, 1], [], []>} : vector<16x64xf32>, vector<64x64xf32>, vector<16x64xf32> -> vector<16x64xf32>
    %48 = tpu.reciprocal %47 {approx = true} : vector<16x64xf32> -> vector<16x64xf32>
    %49 = arith.mulf %45, %48 : vector<16x64xf32>
    %50 = tpu.concatenate %19, %19, %19, %19 in 0 : vector<16x128xf32>, vector<16x128xf32>, vector<16x128xf32>, vector<16x128xf32> -> vector<64x128xf32>
    %c0_23 = arith.constant 0 : index
    %c0_24 = arith.constant 0 : index
    %51 = vector.load %arg10[%c0_23, %c0_24] : memref<64x128xf32, #tpu.memory_space<vmem>>, vector<64x128xf32>
    %52 = arith.mulf %50, %51 : vector<64x128xf32>
    %53 = arith.truncf %49 : vector<16x64xf32> to vector<16x64xbf16>
    %54 = arith.truncf %52 : vector<64x128xf32> to vector<64x128xbf16>
    %cst_25 = arith.constant dense<0.000000e+00> : vector<16x128xf32>
    %55 = tpu.matmul %53, %54, %cst_25 {dimension_numbers = #tpu.dot_dimension_numbers<[1], [0], [0], [1], [0, 0, 1, 1], [], []>} : vector<16x64xbf16>, vector<64x128xbf16>, vector<16x128xf32> -> vector<16x128xf32>
    %56 = arith.truncf %55 : vector<16x128xf32> to vector<16x128xbf16>
    %c0_26 = arith.constant 0 : index
    %c0_27 = arith.constant 0 : index
    %57 = vector.load %arg4[%c0_26, %c0_27] : memref<128x128xbf16, #tpu.memory_space<vmem>>, vector<128x128xbf16>
    %cst_28 = arith.constant dense<0.000000e+00> : vector<16x128xf32>
    %58 = tpu.matmul %56, %57, %cst_28 {dimension_numbers = #tpu.dot_dimension_numbers<[1], [0], [0], [1], [0, 0, 1, 1], [], []>} : vector<16x128xbf16>, vector<128x128xbf16>, vector<16x128xf32> -> vector<16x128xf32>
    %59 = arith.addf %0, %58 : vector<16x128xf32>
    %60 = arith.mulf %59, %59 : vector<16x128xf32>
    %cst_29 = arith.constant dense<0.000000e+00> : vector<16xf32>
    %61 = vector.multi_reduction <add>, %60, %cst_29 [1] : vector<16x128xf32> to vector<16xf32>
    %62 = vector.shape_cast %61 : vector<16xf32> to vector<16x1xf32>
    %cst_30 = arith.constant 3.125000e-02 : f32
    %63 = vector.broadcast %cst_30 : f32 to vector<16x1xf32>
    %64 = arith.mulf %62, %63 : vector<16x1xf32>
    %cst_31 = arith.constant 9.99999997E-7 : f32
    %65 = vector.broadcast %cst_31 : f32 to vector<16x1xf32>
    %66 = arith.addf %64, %65 : vector<16x1xf32>
    %67 = math.rsqrt %66 : vector<16x1xf32>
    %68 = vector.broadcast %67 : vector<16x1xf32> to vector<16x128xf32>
    %69 = arith.mulf %59, %68 : vector<16x128xf32>
    %c0_32 = arith.constant 0 : index
    %c0_33 = arith.constant 0 : index
    %70 = vector.load %arg8[%c0_32, %c0_33] : memref<1x128xf32, #tpu.memory_space<vmem>>, vector<1x128xf32>
    %71 = vector.broadcast %70 : vector<1x128xf32> to vector<16x128xf32>
    %72 = arith.mulf %69, %71 : vector<16x128xf32>
    %73 = arith.truncf %72 : vector<16x128xf32> to vector<16x128xbf16>
    %c0_34 = arith.constant 0 : index
    %c0_35 = arith.constant 0 : index
    %74 = vector.load %arg5[%c0_34, %c0_35] : memref<128x128xbf16, #tpu.memory_space<vmem>>, vector<128x128xbf16>
    %cst_36 = arith.constant dense<0.000000e+00> : vector<16x128xf32>
    %75 = tpu.matmul %73, %74, %cst_36 {dimension_numbers = #tpu.dot_dimension_numbers<[1], [0], [0], [1], [0, 0, 1, 1], [], []>} : vector<16x128xbf16>, vector<128x128xbf16>, vector<16x128xf32> -> vector<16x128xf32>
    %cst_37 = arith.constant 5.000000e-01 : f32
    %76 = vector.broadcast %cst_37 : f32 to vector<16x128xf32>
    %77 = arith.mulf %76, %75 : vector<16x128xf32>
    %78 = math.tanh %77 : vector<16x128xf32>
    %cst_38 = arith.constant 5.000000e-01 : f32
    %79 = vector.broadcast %cst_38 : f32 to vector<16x128xf32>
    %80 = arith.mulf %79, %78 : vector<16x128xf32>
    %cst_39 = arith.constant 5.000000e-01 : f32
    %81 = vector.broadcast %cst_39 : f32 to vector<16x128xf32>
    %82 = arith.addf %80, %81 : vector<16x128xf32>
    %83 = arith.mulf %75, %82 : vector<16x128xf32>
    %c64_i32_40 = arith.constant 64 : i32
    %84 = tpu.dynamic_rotate %75 by %c64_i32_40 dim 1 : vector<16x128xf32>, i32 -> vector<16x128xf32>
    %85 = arith.mulf %83, %84 : vector<16x128xf32>
    %86 = arith.truncf %85 : vector<16x128xf32> to vector<16x128xbf16>
    %c0_41 = arith.constant 0 : index
    %c0_42 = arith.constant 0 : index
    %87 = vector.load %arg6[%c0_41, %c0_42] : memref<128x128xbf16, #tpu.memory_space<vmem>>, vector<128x128xbf16>
    %cst_43 = arith.constant dense<0.000000e+00> : vector<16x128xf32>
    %88 = tpu.matmul %86, %87, %cst_43 {dimension_numbers = #tpu.dot_dimension_numbers<[1], [0], [0], [1], [0, 0, 1, 1], [], []>} : vector<16x128xbf16>, vector<128x128xbf16>, vector<16x128xf32> -> vector<16x128xf32>
    %89 = arith.addf %59, %88 : vector<16x128xf32>
    %c0_44 = arith.constant 0 : index
    %c0_45 = arith.constant 0 : index
    %90 = vector.load %arg13[%c0_44, %c0_45] : memref<16x128xf32, #tpu.memory_space<vmem>>, vector<16x128xf32>
    tpu.vector_store %arg13[%c0_44, %c0_45], %89 {strides = array<i32>} : memref<16x128xf32, #tpu.memory_space<vmem>>, vector<16x128xf32>,
    return
  }
}

</mosaic_0001>

<llo_original>
// kernel: llama_decoder_layer.1
$region0: #{llama_decoder_layer.1}
  #allocation0 [shape = 'u32[]', space=smem, size = 0x4, offset = 0x4, fixed_abs, tag = 'smem constant byte address 0x4 - core index']
  #allocation1 [shape = 'u32[144,128]{1,0:T(1,128)}', space=vmem, size = 0x12000, scoped, tag = 'internal scratch']
  %s0 = inlined_call_operand.vmem [shape: f32[16,128], index: 0, kind: input, shape index: {}]
  %s1 = inlined_call_operand.vmem [shape: f32[16,128], index: 1, kind: input, shape index: {}]
  %s2 = inlined_call_operand.hbm [shape: f32[16,128], index: 2, kind: input, shape index: {}]
  %s3 = inlined_call_operand.vmem [shape: bf16[128,384], index: 3, kind: input, shape index: {}]
  %s4 = inlined_call_operand.vmem [shape: bf16[128,128], index: 4, kind: input, shape index: {}]
  %s5 = inlined_call_operand.hbm [shape: bf16[128,128], index: 5, kind: input, shape index: {}]
  %s6 = inlined_call_operand.hbm [shape: bf16[128,128], index: 6, kind: input, shape index: {}]
  %s7 = inlined_call_operand.vmem [shape: f32[1,128], index: 7, kind: input, shape index: {}]
  %s8 = inlined_call_operand.vmem [shape: f32[1,128], index: 8, kind: input, shape index: {}]
  %s9 = inlined_call_operand.vmem [shape: f32[128,64], index: 9, kind: input, shape index: {}]
  %s10 = inlined_call_operand.hbm [shape: f32[64,128], index: 10, kind: input, shape index: {}]
  %s11 = inlined_call_operand.hbm [shape: f32[64,64], index: 11, kind: input, shape index: {}]
  %s12 = inlined_call_operand.hbm [shape: f32[16,64], index: 12, kind: input, shape index: {}]
  %s13 = inlined_call_operand.vmem [shape: f32[16,128], index: 13, kind: output, shape index: {}]
  %s14 = sld [smem:[#allocation0]]
  $region86: #{llama_decoder_layer.1} parent=0
    _
  %s16 = ssub.s32 1, %s14
  %s17 = scalar_select 0, %s16, %s14
  $region1: #{llama_decoder_layer.1} parent=0
    #allocation2 [shape = 'u8[8192]{0}', space=vmem, size = 0x2000, scoped, tag = 'input window, operand 2, single buffered']
    #allocation3 [shape = 's32[1]{0}', space=sflag, size = 0x4, scoped, tag = 'scoped memory for llama_decoder_layer.1']
    #allocation4 [shape = 'u8[32768]{0}', space=vmem, size = 0x8000, scoped, tag = 'input window, operand 5, single buffered']
    #allocation5 [shape = 's32[1]{0}', space=sflag, size = 0x4, scoped, tag = 'scoped memory for llama_decoder_layer.1']
    #allocation6 [shape = 'u8[32768]{0}', space=vmem, size = 0x8000, scoped, tag = 'input window, operand 6, single buffered']
    #allocation7 [shape = 'u8[32768]{0}', space=vmem, size = 0x8000, scoped, tag = 'input window, operand 10, single buffered']
    #allocation8 [shape = 's32[1]{0}', space=sflag, size = 0x4, scoped, tag = 'scoped memory for llama_decoder_layer.1']
    #allocation9 [shape = 'u8[32768]{0}', space=vmem, size = 0x8000, scoped, tag = 'input window, operand 11, single buffered']
    #allocation10 [shape = 'u8[8192]{0}', space=vmem, size = 0x2000, scoped, tag = 'input window, operand 12, single buffered']
    #allocation11 [shape = 's32[1]{0}', space=sflag, size = 0x4, scoped, tag = 'scoped memory for llama_decoder_layer.1']
    %18 = vsyncpa [#allocation3], 0
    %19 = vsyncpa [#allocation5], 0
    %20 = vsyncpa [#allocation8], 0
    %21 = vsyncpa [#allocation11], 0
    // Predicated region
    $region2: #{llama_decoder_layer.1} parent=1 // pred_check
      _
    $region3: #{llama_decoder_layer.1} parent=1 // pred_check_branch
      %23 = sbr.rel (0) target = $region5
    $region4: #{llama_decoder_layer.1} parent=1 // pred_region
      _
    $region5: #{llama_decoder_layer.1} parent=1 // pred_fallthru
      _
    // Predicated region
    $region6: #{llama_decoder_layer.1} parent=1 // pred_check
      _
    $region7: #{llama_decoder_layer.1} parent=1 // pred_check_branch
      %25 = sbr.rel (0) target = $region9
    $region8: #{llama_decoder_layer.1} parent=1 // pred_region
      _
    $region9: #{llama_decoder_layer.1} parent=1 // pred_fallthru
      _
    // Predicated region
    $region10: #{llama_decoder_layer.1} parent=1 // pred_check
      _
    $region11: #{llama_decoder_layer.1} parent=1 // pred_check_branch
      %27 = sbr.rel (0) target = $region13
    $region12: #{llama_decoder_layer.1} parent=1 // pred_region
      %s29 = ssub.s32 256, 256
      %30 = vsyncadd [#allocation3], %s29
      %s31 = sshll.u32 [#allocation2], 4
      %s32 = int_to_ptr.vmem [resolvable:$true] %s31
      %37 = dma.hbm_to_vmem [thread:$0]  %s2, 256, %s32, [#allocation3], 128, 128, 8
    $region13: #{llama_decoder_layer.1} parent=1 // pred_fallthru
      _
    // Predicated region
    $region14: #{llama_decoder_layer.1} parent=1 // pred_check
      _
    $region15: #{llama_decoder_layer.1} parent=1 // pred_check_branch
      %39 = sbr.rel (0) target = $region17
    $region16: #{llama_decoder_layer.1} parent=1 // pred_region
      _
    $region17: #{llama_decoder_layer.1} parent=1 // pred_fallthru
      _
    // Predicated region
    $region18: #{llama_decoder_layer.1} parent=1 // pred_check
      _
    $region19: #{llama_decoder_layer.1} parent=1 // pred_check_branch
      %41 = sbr.rel (0) target = $region21
    $region20: #{llama_decoder_layer.1} parent=1 // pred_region
      _
    $region21: #{llama_decoder_layer.1} parent=1 // pred_fallthru
      _
    // Predicated region
    $region22: #{llama_decoder_layer.1} parent=1 // pred_check
      _
    $region23: #{llama_decoder_layer.1} parent=1 // pred_check_branch
      %43 = sbr.rel (0) target = $region25
    $region24: #{llama_decoder_layer.1} parent=1 // pred_region
      %s45 = ssub.s32 1024, 1024
      %46 = vsyncadd [#allocation5], %s45
      %s47 = sshll.u32 [#allocation4], 4
      %s48 = int_to_ptr.vmem [resolvable:$true] %s47
      %53 = dma.hbm_to_vmem [thread:$0]  %s5, 1024, %s48, [#allocation5], 64, 64, 4
    $region25: #{llama_decoder_layer.1} parent=1 // pred_fallthru
      _
    // Predicated region
    $region26: #{llama_decoder_layer.1} parent=1 // pred_check
      _
    $region27: #{llama_decoder_layer.1} parent=1 // pred_check_branch
      %55 = sbr.rel (0) target = $region29
    $region28: #{llama_decoder_layer.1} parent=1 // pred_region
      %s57 = ssub.s32 1024, 1024
      %58 = vsyncadd [#allocation5], %s57
      %s59 = sshll.u32 [#allocation6], 4
      %s60 = int_to_ptr.vmem [resolvable:$true] %s59
      %65 = dma.hbm_to_vmem [thread:$0]  %s6, 1024, %s60, [#allocation5], 64, 64, 4
    $region29: #{llama_decoder_layer.1} parent=1 // pred_fallthru
      _
    // Predicated region
    $region30: #{llama_decoder_layer.1} parent=1 // pred_check
      _
    $region31: #{llama_decoder_layer.1} parent=1 // pred_check_branch
      %67 = sbr.rel (0) target = $region33
    $region32: #{llama_decoder_layer.1} parent=1 // pred_region
      _
    $region33: #{llama_decoder_layer.1} parent=1 // pred_fallthru
      _
    // Predicated region
    $region34: #{llama_decoder_layer.1} parent=1 // pred_check
      _
    $region35: #{llama_decoder_layer.1} parent=1 // pred_check_branch
      %69 = sbr.rel (0) target = $region37
    $region36: #{llama_decoder_layer.1} parent=1 // pred_region
      _
    $region37: #{llama_decoder_layer.1} parent=1 // pred_fallthru
      _
    // Predicated region
    $region38: #{llama_decoder_layer.1} parent=1 // pred_check
      _
    $region39: #{llama_decoder_layer.1} parent=1 // pred_check_branch
      %71 = sbr.rel (0) target = $region41
    $region40: #{llama_decoder_layer.1} parent=1 // pred_region
      _
    $region41: #{llama_decoder_layer.1} parent=1 // pred_fallthru
      _
    // Predicated region
    $region42: #{llama_decoder_layer.1} parent=1 // pred_check
      _
    $region43: #{llama_decoder_layer.1} parent=1 // pred_check_branch
      %73 = sbr.rel (0) target = $region45
    $region44: #{llama_decoder_layer.1} parent=1 // pred_region
      %s75 = ssub.s32 1024, 1024
      %76 = vsyncadd [#allocation8], %s75
      %s77 = sshll.u32 [#allocation7], 4
      %s78 = int_to_ptr.vmem [resolvable:$true] %s77
      %83 = dma.hbm_to_vmem [thread:$0]  %s10, 1024, %s78, [#allocation8], 128, 128, 8
    $region45: #{llama_decoder_layer.1} parent=1 // pred_fallthru
      _
    // Predicated region
    $region46: #{llama_decoder_layer.1} parent=1 // pred_check
      _
    $region47: #{llama_decoder_layer.1} parent=1 // pred_check_branch
      %85 = sbr.rel (0) target = $region49
    $region48: #{llama_decoder_layer.1} parent=1 // pred_region
      %s87 = ssub.s32 1024, 1024
      %88 = vsyncadd [#allocation8], %s87
      %s89 = sshll.u32 [#allocation9], 4
      %s90 = int_to_ptr.vmem [resolvable:$true] %s89
      %95 = dma.hbm_to_vmem [thread:$0]  %s11, 1024, %s90, [#allocation8], 128, 128, 8
    $region49: #{llama_decoder_layer.1} parent=1 // pred_fallthru
      _
    // Predicated region
    $region50: #{llama_decoder_layer.1} parent=1 // pred_check
      _
    $region51: #{llama_decoder_layer.1} parent=1 // pred_check_branch
      %97 = sbr.rel (0) target = $region53
    $region52: #{llama_decoder_layer.1} parent=1 // pred_region
      %s99 = ssub.s32 256, 256
      %100 = vsyncadd [#allocation11], %s99
      %s101 = sshll.u32 [#allocation10], 4
      %s102 = int_to_ptr.vmem [resolvable:$true] %s101
      %107 = dma.hbm_to_vmem [thread:$0]  %s12, 256, %s102, [#allocation11], 128, 128, 8
    $region53: #{llama_decoder_layer.1} parent=1 // pred_fallthru
      _
    // Predicated region
    $region54: #{llama_decoder_layer.1} parent=1 // pred_check
      _
    $region55: #{llama_decoder_layer.1} parent=1 // pred_check_branch
      %109 = sbr.rel (0) target = $region57
    $region56: #{llama_decoder_layer.1} parent=1 // pred_region
      %110 = dma.done [#allocation3], 256
    $region57: #{llama_decoder_layer.1} parent=1 // pred_fallthru
      _
    // Predicated region
    $region58: #{llama_decoder_layer.1} parent=1 // pred_check
      _
    $region59: #{llama_decoder_layer.1} parent=1 // pred_check_branch
      %112 = sbr.rel (0) target = $region61
    $region60: #{llama_decoder_layer.1} parent=1 // pred_region
      %113 = dma.done [#allocation5], 1024
    $region61: #{llama_decoder_layer.1} parent=1 // pred_fallthru
      _
    // Predicated region
    $region62: #{llama_decoder_layer.1} parent=1 // pred_check
      _
    $region63: #{llama_decoder_layer.1} parent=1 // pred_check_branch
      %115 = sbr.rel (0) target = $region65
    $region64: #{llama_decoder_layer.1} parent=1 // pred_region
      %116 = dma.done [#allocation5], 1024
    $region65: #{llama_decoder_layer.1} parent=1 // pred_fallthru
      _
    // Predicated region
    $region66: #{llama_decoder_layer.1} parent=1 // pred_check
      _
    $region67: #{llama_decoder_layer.1} parent=1 // pred_check_branch
      %118 = sbr.rel (0) target = $region69
    $region68: #{llama_decoder_layer.1} parent=1 // pred_region
      %119 = dma.done [#allocation8], 1024
    $region69: #{llama_decoder_layer.1} parent=1 // pred_fallthru
      _
    // Predicated region
    $region70: #{llama_decoder_layer.1} parent=1 // pred_check
      _
    $region71: #{llama_decoder_layer.1} parent=1 // pred_check_branch
      %121 = sbr.rel (0) target = $region73
    $region72: #{llama_decoder_layer.1} parent=1 // pred_region
      %122 = dma.done [#allocation8], 1024
    $region73: #{llama_decoder_layer.1} parent=1 // pred_fallthru
      _
    // Predicated region
    $region74: #{llama_decoder_layer.1} parent=1 // pred_check
      _
    $region75: #{llama_decoder_layer.1} parent=1 // pred_check_branch
      %124 = sbr.rel (0) target = $region77
    $region76: #{llama_decoder_layer.1} parent=1 // pred_region
      %125 = dma.done [#allocation11], 256
    $region77: #{llama_decoder_layer.1} parent=1 // pred_fallthru
      _
    %v127 = vld [vmem:[%s0] sm:$0xff]
    %v128 = vld [vmem:[%s0 + $0x8] sm:$0xff]
    %v129 = vmul.f32 %v127, %v127
    %v130 = vmul.f32 %v128, %v128
    %131 = vadd.xlane.f32.xlu0 %v129
    %v132 = vpop.xlane.xlu0 %131
    %133 = vadd.xlane.f32.xlu0 %v130
    %v134 = vpop.xlane.xlu0 %133
    %v135 = vmul.f32 %v132, 0.03125
    %v136 = vmul.f32 %v134, 0.03125
    %v137 = vadd.f32 %v135, 1e-06
    %v138 = vadd.f32 %v136, 1e-06
    %v139 = vrsqrt.pop %v137
    %v140 = vrsqrt.pop %v138
    %v141 = vmul.f32 %v127, %v139
    %v142 = vmul.f32 %v128, %v140
    %v143 = vld [vmem:[%s7] sm:$0x1]
    %v145 = vlaneseq
    %v146 = vshrl.u32 %v145, 7
    %v147 = vsub.s32 0, %v146
    %v148 = vrot.slane %v143, %v147
    %v150 = vmul.f32 %v141, %v148
    %v151 = vmul.f32 %v142, %v148
    %v152 = vpack.c.bf16 %v151, %v150
    %v153 = vld [vmem:[%s3] sm:$0xff]
    %v154 = vld [vmem:[%s3 + $0x8] sm:$0xf]
    %v155 = vld [vmem:[%s3 + $0xc] sm:$0xff]
    %v156 = vld [vmem:[%s3 + $0x14] sm:$0xf]
    %v157 = vld [vmem:[%s3 + $0x18] sm:$0xff]
    %v158 = vld [vmem:[%s3 + $0x20] sm:$0xf]
    %v159 = vld [vmem:[%s3 + $0x24] sm:$0xff]
    %v160 = vld [vmem:[%s3 + $0x2c] sm:$0xf]
    %v161 = vld [vmem:[%s3 + $0x30] sm:$0xff]
    %v162 = vld [vmem:[%s3 + $0x38] sm:$0xf]
    %v163 = vld [vmem:[%s3 + $0x3c] sm:$0xff]
    %v164 = vld [vmem:[%s3 + $0x44] sm:$0xf]
    %v165 = vld [vmem:[%s3 + $0x48] sm:$0xff]
    %v166 = vld [vmem:[%s3 + $0x50] sm:$0xf]
    %v167 = vld [vmem:[%s3 + $0x54] sm:$0xff]
    %v168 = vld [vmem:[%s3 + $0x5c] sm:$0xf]
    %v169 = vld [vmem:[%s3 + $0x60] sm:$0xff]
    %v170 = vld [vmem:[%s3 + $0x68] sm:$0xf]
    %v171 = vld [vmem:[%s3 + $0x6c] sm:$0xff]
    %v172 = vld [vmem:[%s3 + $0x74] sm:$0xf]
    %v173 = vld [vmem:[%s3 + $0x78] sm:$0xff]
    %v174 = vld [vmem:[%s3 + $0x80] sm:$0xf]
    %v175 = vld [vmem:[%s3 + $0x84] sm:$0xff]
    %v176 = vld [vmem:[%s3 + $0x8c] sm:$0xf]
    %v177 = vld [vmem:[%s3 + $0x90] sm:$0xff]
    %v178 = vld [vmem:[%s3 + $0x98] sm:$0xf]
    %v179 = vld [vmem:[%s3 + $0x9c] sm:$0xff]
    %v180 = vld [vmem:[%s3 + $0xa4] sm:$0xf]
    %v181 = vld [vmem:[%s3 + $0xa8] sm:$0xff]
    %v182 = vld [vmem:[%s3 + $0xb0] sm:$0xf]
    %v183 = vld [vmem:[%s3 + $0xb4] sm:$0xff]
    %v184 = vld [vmem:[%s3 + $0xbc] sm:$0xf]
    %v217 = vunpack.c.l.b16 %v153
    %v218 = vunpack.c.h.b16 %v153
    %v219 = vunpack.c.l.b16 %v154
    %v220 = vunpack.c.l.b16 %v155
    %v221 = vunpack.c.h.b16 %v155
    %v222 = vunpack.c.l.b16 %v156
    %v223 = vunpack.c.l.b16 %v157
    %v224 = vunpack.c.h.b16 %v157
    %v225 = vunpack.c.l.b16 %v158
    %v226 = vunpack.c.l.b16 %v159
    %v227 = vunpack.c.h.b16 %v159
    %v228 = vunpack.c.l.b16 %v160
    %v229 = vunpack.c.l.b16 %v161
    %v230 = vunpack.c.h.b16 %v161
    %v231 = vunpack.c.l.b16 %v162
    %v232 = vunpack.c.l.b16 %v163
    %v233 = vunpack.c.h.b16 %v163
    %v234 = vunpack.c.l.b16 %v164
    %v235 = vunpack.c.l.b16 %v165
    %v236 = vunpack.c.h.b16 %v165
    %v237 = vunpack.c.l.b16 %v166
    %v238 = vunpack.c.l.b16 %v167
    %v239 = vunpack.c.h.b16 %v167
    %v240 = vunpack.c.l.b16 %v168
    %v241 = vunpack.c.l.b16 %v169
    %v242 = vunpack.c.h.b16 %v169
    %v243 = vunpack.c.l.b16 %v170
    %v244 = vunpack.c.l.b16 %v171
    %v245 = vunpack.c.h.b16 %v171
    %v246 = vunpack.c.l.b16 %v172
    %v247 = vunpack.c.l.b16 %v173
    %v248 = vunpack.c.h.b16 %v173
    %v249 = vunpack.c.l.b16 %v174
    %v250 = vunpack.c.l.b16 %v175
    %v251 = vunpack.c.h.b16 %v175
    %v252 = vunpack.c.l.b16 %v176
    %v253 = vunpack.c.l.b16 %v177
    %v254 = vunpack.c.h.b16 %v177
    %v255 = vunpack.c.l.b16 %v178
    %v256 = vunpack.c.l.b16 %v179
    %v257 = vunpack.c.h.b16 %v179
    %v258 = vunpack.c.l.b16 %v180
    %v259 = vunpack.c.l.b16 %v181
    %v260 = vunpack.c.h.b16 %v181
    %v261 = vunpack.c.l.b16 %v182
    %v262 = vunpack.c.l.b16 %v183
    %v263 = vunpack.c.h.b16 %v183
    %v264 = vunpack.c.l.b16 %v184
    %v265 = vpack.c.b16 %v220, %v217
    %v266 = vpack.c.b16 %v221, %v218
    %v267 = vpack.c.b16 %v222, %v219
    %v268 = vpack.c.b16 %v226, %v223
    %v269 = vpack.c.b16 %v227, %v224
    %v270 = vpack.c.b16 %v228, %v225
    %v271 = vpack.c.b16 %v232, %v229
    %v272 = vpack.c.b16 %v233, %v230
    %v273 = vpack.c.b16 %v234, %v231
    %v274 = vpack.c.b16 %v238, %v235
    %v275 = vpack.c.b16 %v239, %v236
    %v276 = vpack.c.b16 %v240, %v237
    %v277 = vpack.c.b16 %v244, %v241
    %v278 = vpack.c.b16 %v245, %v242
    %v279 = vpack.c.b16 %v246, %v243
    %v280 = vpack.c.b16 %v250, %v247
    %v281 = vpack.c.b16 %v251, %v248
    %v282 = vpack.c.b16 %v252, %v249
    %v283 = vpack.c.b16 %v256, %v253
    %v284 = vpack.c.b16 %v257, %v254
    %v285 = vpack.c.b16 %v258, %v255
    %v286 = vpack.c.b16 %v262, %v259
    %v287 = vpack.c.b16 %v263, %v260
    %v288 = vpack.c.b16 %v264, %v261
    %313 = vmatprep.subr.bf16.mxu0 %v266
    %314 = vmatpush1.bf16.msra.mxu0 %v265
    %315 = vmatprep.subr.bf16.mxu0 %v269
    %316 = vmatpush1.bf16.msra.mxu0 %v268
    %317 = vmatprep.subr.bf16.mxu0 %v272
    %318 = vmatpush1.bf16.msra.mxu0 %v271
    %319 = vmatprep.subr.bf16.mxu0 %v275
    %320 = vmatpush1.bf16.msra.mxu0 %v274
    %321 = vmatprep.subr.bf16.mxu0 %v278
    %322 = vmatpush1.bf16.msra.mxu0 %v277
    %323 = vmatprep.subr.bf16.mxu0 %v281
    %324 = vmatpush1.bf16.msra.mxu0 %v280
    %325 = vmatprep.subr.bf16.mxu0 %v284
    %326 = vmatpush1.bf16.msra.mxu0 %v283
    %327 = vmatprep.subr.bf16.mxu0 %v287
    %328 = vmatpush1.bf16.msra.mxu0 %v286
    %329 = vmatprep.subr.bf16.mxu0 0
    %330 = vmatpush1.bf16.msra.mxu0 0
    %331 = vmatprep.subr.bf16.mxu0 0
    %332 = vmatpush1.bf16.msra.mxu0 0
    %333 = vmatprep.subr.bf16.mxu0 0
    %334 = vmatpush1.bf16.msra.mxu0 0
    %335 = vmatprep.subr.bf16.mxu0 0
    %336 = vmatpush1.bf16.msra.mxu0 0
    %337 = vmatprep.subr.bf16.mxu0 0
    %338 = vmatpush1.bf16.msra.mxu0 0
    %339 = vmatprep.subr.bf16.mxu0 0
    %340 = vmatpush1.bf16.msra.mxu0 0
    %341 = vmatprep.subr.bf16.mxu0 0
    %342 = vmatpush1.bf16.msra.mxu0 0
    %343 = vmatprep.subr.bf16.mxu0 0
    %344 = vmatpush1.bf16.msra.mxu0 0
    %345 = vmatprep.mubr.bf16.mxu0 0
    %346 = vmatmul.mubr.bf16.gmra.mrb[0].mxu0 %v152
    %v347 = vpop.f32.mrb[0].mxu0
    %v348 = vadd.f32 0.0, %v347
    %v349 = vpop.f32.mrb[0].mxu0
    %v350 = vadd.f32 0.0, %v349
    %v351 = vpop.f32.mrb[0].mxu0
    %v352 = vadd.f32 0.0, %v351
    %v353 = vpop.f32.mrb[0].mxu0
    %v354 = vadd.f32 0.0, %v353
    %355 = vdwg.mxu0
    %356 = vmatprep.subr.bf16.mxu0 0
    %357 = vmatpush1.bf16.msra.mxu0 %v267
    %358 = vmatprep.subr.bf16.mxu0 0
    %359 = vmatpush1.bf16.msra.mxu0 %v270
    %360 = vmatprep.subr.bf16.mxu0 0
    %361 = vmatpush1.bf16.msra.mxu0 %v273
    %362 = vmatprep.subr.bf16.mxu0 0
    %363 = vmatpush1.bf16.msra.mxu0 %v276
    %364 = vmatprep.subr.bf16.mxu0 0
    %365 = vmatpush1.bf16.msra.mxu0 %v279
    %366 = vmatprep.subr.bf16.mxu0 0
    %367 = vmatpush1.bf16.msra.mxu0 %v282
    %368 = vmatprep.subr.bf16.mxu0 0
    %369 = vmatpush1.bf16.msra.mxu0 %v285
    %370 = vmatprep.subr.bf16.mxu0 0
    %371 = vmatpush1.bf16.msra.mxu0 %v288
    %372 = vmatprep.subr.bf16.mxu0 0
    %373 = vmatpush1.bf16.msra.mxu0 0
    %374 = vmatprep.subr.bf16.mxu0 0
    %375 = vmatpush1.bf16.msra.mxu0 0
    %376 = vmatprep.subr.bf16.mxu0 0
    %377 = vmatpush1.bf16.msra.mxu0 0
    %378 = vmatprep.subr.bf16.mxu0 0
    %379 = vmatpush1.bf16.msra.mxu0 0
    %380 = vmatprep.subr.bf16.mxu0 0
    %381 = vmatpush1.bf16.msra.mxu0 0
    %382 = vmatprep.subr.bf16.mxu0 0
    %383 = vmatpush1.bf16.msra.mxu0 0
    %384 = vmatprep.subr.bf16.mxu0 0
    %385 = vmatpush1.bf16.msra.mxu0 0
    %386 = vmatprep.subr.bf16.mxu0 0
    %387 = vmatpush1.bf16.msra.mxu0 0
    %388 = vmatprep.mubr.bf16.mxu0 0
    %389 = vmatmul.mubr.bf16.gmra.mrb[0].mxu0 %v152
    %v390 = vpop.f32.mrb[0].mxu0
    %v391 = vadd.f32 0.0, %v390
    %v392 = vpop.f32.mrb[0].mxu0
    %v393 = vpop.f32.mrb[0].mxu0
    %v394 = vadd.f32 0.0, %v393
    %v395 = vpop.f32.mrb[0].mxu0
    %396 = vdwg.mxu0
    %v397 = vld [vmem:[%s1] sm:$0xff]
    %v398 = vld [vmem:[%s1 + $0x8] sm:$0xff]
    %v399 = vld [vmem:[#allocation2] sm:$0xff]
    %v400 = vld [vmem:[#allocation2 + $0x8] sm:$0xff]
    %v401 = vmul.f32 %v348, %v397
    %v402 = vmul.f32 %v352, %v398
    %403 = vrot.lane.b32.xlu0 %v348, 64
    %v404 = vpop.permute.xlu0 %403
    %405 = vrot.lane.b32.xlu0 %v352, 64
    %v406 = vpop.permute.xlu0 %405
    %v407 = vmul.f32 %v404, %v399
    %v408 = vmul.f32 %v406, %v400
    %v409 = vadd.f32 %v401, %v407
    %v410 = vadd.f32 %v402, %v408
    %v411 = vmul.f32 %v350, %v397
    %v412 = vmul.f32 %v354, %v398
    %413 = vrot.lane.b32.xlu0 %v350, 64
    %v414 = vpop.permute.xlu0 %413
    %415 = vrot.lane.b32.xlu0 %v354, 64
    %v416 = vpop.permute.xlu0 %415
    %v417 = vmul.f32 %v414, %v399
    %v418 = vmul.f32 %v416, %v400
    %v419 = vadd.f32 %v411, %v417
    %v420 = vadd.f32 %v412, %v418
    %v421 = vmul.f32 %v409, 0.35355338
    %v422 = vmul.f32 %v410, 0.35355338
    %423 = vxpose.xlu0.b32.start [1/16] %v419, 128
    %424 = vxpose.xlu0.b32.cont [2/16] %v420, 128
    %425 = vxpose.xlu0.b32.cont [3/16] 0.0, 128
    %426 = vxpose.xlu0.b32.cont [4/16] 0.0, 128
    %427 = vxpose.xlu0.b32.cont [5/16] 0.0, 128
    %428 = vxpose.xlu0.b32.cont [6/16] 0.0, 128
    %429 = vxpose.xlu0.b32.cont [7/16] 0.0, 128
    %430 = vxpose.xlu0.b32.cont [8/16] 0.0, 128
    %431 = vxpose.xlu0.b32.cont [9/16] 0.0, 128
    %432 = vxpose.xlu0.b32.cont [10/16] 0.0, 128
    %433 = vxpose.xlu0.b32.cont [11/16] 0.0, 128
    %434 = vxpose.xlu0.b32.cont [12/16] 0.0, 128
    %435 = vxpose.xlu0.b32.cont [13/16] 0.0, 128
    %436 = vxpose.xlu0.b32.cont [14/16] 0.0, 128
    %437 = vxpose.xlu0.b32.cont [15/16] 0.0, 128
    %438 = vxpose.xlu0.b32.end [16/16] 0.0, 128
    %v439 = vpop.trf.xlu0
    %v440 = vpop.trf.xlu0
    %v441 = vpop.trf.xlu0
    %v442 = vpop.trf.xlu0
    %v443 = vpop.trf.xlu0
    %v444 = vpop.trf.xlu0
    %v445 = vpop.trf.xlu0
    %v446 = vpop.trf.xlu0
    %v447 = vpop.trf.xlu0
    %v448 = vpop.trf.xlu0
    %v449 = vpop.trf.xlu0
    %v450 = vpop.trf.xlu0
    %v451 = vpop.trf.xlu0
    %v452 = vpop.trf.xlu0
    %v453 = vpop.trf.xlu0
    %v454 = vpop.trf.xlu0
    %471 = vrot.lane.b32.xlu0 %v439, 16
    %v472 = vpop.permute.xlu0 %471
    %473 = vrot.lane.b32.xlu0 %v440, 16
    %v474 = vpop.permute.xlu0 %473
    %475 = vrot.lane.b32.xlu0 %v441, 16
    %v476 = vpop.permute.xlu0 %475
    %477 = vrot.lane.b32.xlu0 %v442, 16
    %v478 = vpop.permute.xlu0 %477
    %479 = vrot.lane.b32.xlu0 %v443, 16
    %v480 = vpop.permute.xlu0 %479
    %481 = vrot.lane.b32.xlu0 %v444, 16
    %v482 = vpop.permute.xlu0 %481
    %483 = vrot.lane.b32.xlu0 %v445, 16
    %v484 = vpop.permute.xlu0 %483
    %485 = vrot.lane.b32.xlu0 %v446, 16
    %v486 = vpop.permute.xlu0 %485
    %487 = vrot.lane.b32.xlu0 %v447, 16
    %v488 = vpop.permute.xlu0 %487
    %489 = vrot.lane.b32.xlu0 %v448, 16
    %v490 = vpop.permute.xlu0 %489
    %491 = vrot.lane.b32.xlu0 %v449, 16
    %v492 = vpop.permute.xlu0 %491
    %493 = vrot.lane.b32.xlu0 %v450, 16
    %v494 = vpop.permute.xlu0 %493
    %495 = vrot.lane.b32.xlu0 %v451, 16
    %v496 = vpop.permute.xlu0 %495
    %497 = vrot.lane.b32.xlu0 %v452, 16
    %v498 = vpop.permute.xlu0 %497
    %499 = vrot.lane.b32.xlu0 %v453, 16
    %v500 = vpop.permute.xlu0 %499
    %501 = vrot.lane.b32.xlu0 %v454, 16
    %v502 = vpop.permute.xlu0 %501
    %519 = vrot.lane.b32.xlu0 %v439, 32
    %v520 = vpop.permute.xlu0 %519
    %521 = vrot.lane.b32.xlu0 %v440, 32
    %v522 = vpop.permute.xlu0 %521
    %523 = vrot.lane.b32.xlu0 %v441, 32
    %v524 = vpop.permute.xlu0 %523
    %525 = vrot.lane.b32.xlu0 %v442, 32
    %v526 = vpop.permute.xlu0 %525
    %527 = vrot.lane.b32.xlu0 %v443, 32
    %v528 = vpop.permute.xlu0 %527
    %529 = vrot.lane.b32.xlu0 %v444, 32
    %v530 = vpop.permute.xlu0 %529
    %531 = vrot.lane.b32.xlu0 %v445, 32
    %v532 = vpop.permute.xlu0 %531
    %533 = vrot.lane.b32.xlu0 %v446, 32
    %v534 = vpop.permute.xlu0 %533
    %535 = vrot.lane.b32.xlu0 %v447, 32
    %v536 = vpop.permute.xlu0 %535
    %537 = vrot.lane.b32.xlu0 %v448, 32
    %v538 = vpop.permute.xlu0 %537
    %539 = vrot.lane.b32.xlu0 %v449, 32
    %v540 = vpop.permute.xlu0 %539
    %541 = vrot.lane.b32.xlu0 %v450, 32
    %v542 = vpop.permute.xlu0 %541
    %543 = vrot.lane.b32.xlu0 %v451, 32
    %v544 = vpop.permute.xlu0 %543
    %545 = vrot.lane.b32.xlu0 %v452, 32
    %v546 = vpop.permute.xlu0 %545
    %547 = vrot.lane.b32.xlu0 %v453, 32
    %v548 = vpop.permute.xlu0 %547
    %549 = vrot.lane.b32.xlu0 %v454, 32
    %v550 = vpop.permute.xlu0 %549
    %567 = vrot.lane.b32.xlu0 %v439, 48
    %v568 = vpop.permute.xlu0 %567
    %569 = vrot.lane.b32.xlu0 %v440, 48
    %v570 = vpop.permute.xlu0 %569
    %571 = vrot.lane.b32.xlu0 %v441, 48
    %v572 = vpop.permute.xlu0 %571
    %573 = vrot.lane.b32.xlu0 %v442, 48
    %v574 = vpop.permute.xlu0 %573
    %575 = vrot.lane.b32.xlu0 %v443, 48
    %v576 = vpop.permute.xlu0 %575
    %577 = vrot.lane.b32.xlu0 %v444, 48
    %v578 = vpop.permute.xlu0 %577
    %579 = vrot.lane.b32.xlu0 %v445, 48
    %v580 = vpop.permute.xlu0 %579
    %581 = vrot.lane.b32.xlu0 %v446, 48
    %v582 = vpop.permute.xlu0 %581
    %583 = vrot.lane.b32.xlu0 %v447, 48
    %v584 = vpop.permute.xlu0 %583
    %585 = vrot.lane.b32.xlu0 %v448, 48
    %v586 = vpop.permute.xlu0 %585
    %587 = vrot.lane.b32.xlu0 %v449, 48
    %v588 = vpop.permute.xlu0 %587
    %589 = vrot.lane.b32.xlu0 %v450, 48
    %v590 = vpop.permute.xlu0 %589
    %591 = vrot.lane.b32.xlu0 %v451, 48
    %v592 = vpop.permute.xlu0 %591
    %593 = vrot.lane.b32.xlu0 %v452, 48
    %v594 = vpop.permute.xlu0 %593
    %595 = vrot.lane.b32.xlu0 %v453, 48
    %v596 = vpop.permute.xlu0 %595
    %597 = vrot.lane.b32.xlu0 %v454, 48
    %v598 = vpop.permute.xlu0 %597
    %vm615 = vcmask 130048
    %v616 = vsel %vm615, %v439, %v472
    %v617 = vsel %vm615, %v440, %v474
    %v618 = vsel %vm615, %v441, %v476
    %v619 = vsel %vm615, %v442, %v478
    %v620 = vsel %vm615, %v443, %v480
    %v621 = vsel %vm615, %v444, %v482
    %v622 = vsel %vm615, %v445, %v484
    %v623 = vsel %vm615, %v446, %v486
    %v624 = vsel %vm615, %v447, %v488
    %v625 = vsel %vm615, %v448, %v490
    %v626 = vsel %vm615, %v449, %v492
    %v627 = vsel %vm615, %v450, %v494
    %v628 = vsel %vm615, %v451, %v496
    %v629 = vsel %vm615, %v452, %v498
    %v630 = vsel %vm615, %v453, %v500
    %v631 = vsel %vm615, %v454, %v502
    %vm632 = vcmask 261120
    %v633 = vsel %vm632, %v616, %v520
    %v634 = vsel %vm632, %v617, %v522
    %v635 = vsel %vm632, %v618, %v524
    %v636 = vsel %vm632, %v619, %v526
    %v637 = vsel %vm632, %v620, %v528
    %v638 = vsel %vm632, %v621, %v530
    %v639 = vsel %vm632, %v622, %v532
    %v640 = vsel %vm632, %v623, %v534
    %v641 = vsel %vm632, %v624, %v536
    %v642 = vsel %vm632, %v625, %v538
    %v643 = vsel %vm632, %v626, %v540
    %v644 = vsel %vm632, %v627, %v542
    %v645 = vsel %vm632, %v628, %v544
    %v646 = vsel %vm632, %v629, %v546
    %v647 = vsel %vm632, %v630, %v548
    %v648 = vsel %vm632, %v631, %v550
    %vm649 = vcmask 392192
    %v650 = vsel %vm649, %v633, %v568
    %v651 = vsel %vm649, %v634, %v570
    %v652 = vsel %vm649, %v635, %v572
    %v653 = vsel %vm649, %v636, %v574
    %v654 = vsel %vm649, %v637, %v576
    %v655 = vsel %vm649, %v638, %v578
    %v656 = vsel %vm649, %v639, %v580
    %v657 = vsel %vm649, %v640, %v582
    %v658 = vsel %vm649, %v641, %v584
    %v659 = vsel %vm649, %v642, %v586
    %v660 = vsel %vm649, %v643, %v588
    %v661 = vsel %vm649, %v644, %v590
    %v662 = vsel %vm649, %v645, %v592
    %v663 = vsel %vm649, %v646, %v594
    %v664 = vsel %vm649, %v647, %v596
    %v665 = vsel %vm649, %v648, %v598
    %v666 = vld [vmem:[%s9] sm:$0xff]
    %v667 = vld [vmem:[%s9 + $0x8] sm:$0xff]
    %v668 = vld [vmem:[%s9 + $0x10] sm:$0xff]
    %v669 = vld [vmem:[%s9 + $0x18] sm:$0xff]
    %v670 = vld [vmem:[%s9 + $0x20] sm:$0xff]
    %v671 = vld [vmem:[%s9 + $0x28] sm:$0xff]
    %v672 = vld [vmem:[%s9 + $0x30] sm:$0xff]
    %v673 = vld [vmem:[%s9 + $0x38] sm:$0xff]
    %v674 = vld [vmem:[%s9 + $0x40] sm:$0xff]
    %v675 = vld [vmem:[%s9 + $0x48] sm:$0xff]
    %v676 = vld [vmem:[%s9 + $0x50] sm:$0xff]
    %v677 = vld [vmem:[%s9 + $0x58] sm:$0xff]
    %v678 = vld [vmem:[%s9 + $0x60] sm:$0xff]
    %v679 = vld [vmem:[%s9 + $0x68] sm:$0xff]
    %v680 = vld [vmem:[%s9 + $0x70] sm:$0xff]
    %v681 = vld [vmem:[%s9 + $0x78] sm:$0xff]
    %v682 = vmul.f32 %v650, %v666
    %v683 = vmul.f32 %v651, %v667
    %v684 = vmul.f32 %v652, %v668
    %v685 = vmul.f32 %v653, %v669
    %v686 = vmul.f32 %v654, %v670
    %v687 = vmul.f32 %v655, %v671
    %v688 = vmul.f32 %v656, %v672
    %v689 = vmul.f32 %v657, %v673
    %v690 = vmul.f32 %v658, %v674
    %v691 = vmul.f32 %v659, %v675
    %v692 = vmul.f32 %v660, %v676
    %v693 = vmul.f32 %v661, %v677
    %v694 = vmul.f32 %v662, %v678
    %v695 = vmul.f32 %v663, %v679
    %v696 = vmul.f32 %v664, %v680
    %v697 = vmul.f32 %v665, %v681
    %v698 = vpack.c.bf16 %v422, %v421
    %v699 = vpack.c.bf16 %v683, %v682
    %v700 = vpack.c.bf16 %v685, %v684
    %v701 = vpack.c.bf16 %v687, %v686
    %v702 = vpack.c.bf16 %v689, %v688
    %v703 = vpack.c.bf16 %v691, %v690
    %v704 = vpack.c.bf16 %v693, %v692
    %v705 = vpack.c.bf16 %v695, %v694
    %v706 = vpack.c.bf16 %v697, %v696
    %v707 = vld [vmem:[#allocation10] sm:$0xff]
    %v708 = vld [vmem:[#allocation10 + $0x8] sm:$0xff]
    %709 = vmatprep.subr.bf16.mxu0 0
    %710 = vmatpush1.bf16.msra.mxu0 %v699
    %711 = vmatprep.subr.bf16.mxu0 0
    %712 = vmatpush1.bf16.msra.mxu0 %v700
    %713 = vmatprep.subr.bf16.mxu0 0
    %714 = vmatpush1.bf16.msra.mxu0 %v701
    %715 = vmatprep.subr.bf16.mxu0 0
    %716 = vmatpush1.bf16.msra.mxu0 %v702
    %717 = vmatprep.subr.bf16.mxu0 0
    %718 = vmatpush1.bf16.msra.mxu0 %v703
    %719 = vmatprep.subr.bf16.mxu0 0
    %720 = vmatpush1.bf16.msra.mxu0 %v704
    %721 = vmatprep.subr.bf16.mxu0 0
    %722 = vmatpush1.bf16.msra.mxu0 %v705
    %723 = vmatprep.subr.bf16.mxu0 0
    %724 = vmatpush1.bf16.msra.mxu0 %v706
    %725 = vmatprep.subr.bf16.mxu0 0
    %726 = vmatpush1.bf16.msra.mxu0 0
    %727 = vmatprep.subr.bf16.mxu0 0
    %728 = vmatpush1.bf16.msra.mxu0 0
    %729 = vmatprep.subr.bf16.mxu0 0
    %730 = vmatpush1.bf16.msra.mxu0 0
    %731 = vmatprep.subr.bf16.mxu0 0
    %732 = vmatpush1.bf16.msra.mxu0 0
    %733 = vmatprep.subr.bf16.mxu0 0
    %734 = vmatpush1.bf16.msra.mxu0 0
    %735 = vmatprep.subr.bf16.mxu0 0
    %736 = vmatpush1.bf16.msra.mxu0 0
    %737 = vmatprep.subr.bf16.mxu0 0
    %738 = vmatpush1.bf16.msra.mxu0 0
    %739 = vmatprep.subr.bf16.mxu0 0
    %740 = vmatpush1.bf16.msra.mxu0 0
    %741 = vmatprep.mubr.bf16.mxu0 0
    %742 = vmatmul.mubr.bf16.gmra.mrb[0].mxu0 %v698
    %v743 = vpop.f32.mrb[0].mxu0
    %v744 = vadd.f32 %v707, %v743
    %v745 = vpop.f32.mrb[0].mxu0
    %v746 = vpop.f32.mrb[0].mxu0
    %v747 = vadd.f32 %v708, %v746
    %v748 = vpop.f32.mrb[0].mxu0
    %749 = vdwg.mxu0
    %vm750 = vcmask 523264
    %v751 = vsel %vm750, %v744, -inf
    %752 = vmax.xlane.f32.xlu0 %v751
    %v753 = vpop.xlane.xlu0 %752
    %v754 = vsel %vm750, %v747, -inf
    %755 = vmax.xlane.f32.xlu0 %v754
    %v756 = vpop.xlane.xlu0 %755
    %v757 = vsub.f32 %v744, %v753
    %v758 = vsub.f32 %v747, %v756
    %v759 = vmul.f32 %v757, 1.442695
    %v760 = vpow.pop %v759
    %v761 = vmul.f32 %v758, 1.442695
    %v762 = vpow.pop %v761
    %v763 = vld [vmem:[#allocation9] sm:$0xff]
    %v764 = vld [vmem:[#allocation9 + $0x8] sm:$0xff]
    %v765 = vld [vmem:[#allocation9 + $0x10] sm:$0xff]
    %v766 = vld [vmem:[#allocation9 + $0x18] sm:$0xff]
    %v767 = vld [vmem:[#allocation9 + $0x20] sm:$0xff]
    %v768 = vld [vmem:[#allocation9 + $0x28] sm:$0xff]
    %v769 = vld [vmem:[#allocation9 + $0x30] sm:$0xff]
    %v770 = vld [vmem:[#allocation9 + $0x38] sm:$0xff]
    %v772 = vsel %vm750, %v760, 0
    %v775 = vsel %vm750, %v762, 0
    %777 = vmatprep.subr.mxu0 0.0
    %778 = vmatpush1.msra.mxu0 %v763
    %779 = vmatprep.subr.mxu0 0.0
    %780 = vmatpush1.msra.mxu0 %v764
    %781 = vmatprep.subr.mxu0 0.0
    %782 = vmatpush1.msra.mxu0 %v765
    %783 = vmatprep.subr.mxu0 0.0
    %784 = vmatpush1.msra.mxu0 %v766
    %785 = vmatprep.subr.mxu0 0.0
    %786 = vmatpush1.msra.mxu0 %v767
    %787 = vmatprep.subr.mxu0 0.0
    %788 = vmatpush1.msra.mxu0 %v768
    %789 = vmatprep.subr.mxu0 0.0
    %790 = vmatpush1.msra.mxu0 %v769
    %791 = vmatprep.subr.mxu0 0.0
    %792 = vmatpush1.msra.mxu0 %v770
    %793 = vmatprep.subr.mxu0 0.0
    %794 = vmatpush1.msra.mxu0 0.0
    %795 = vmatprep.subr.mxu0 0.0
    %796 = vmatpush1.msra.mxu0 0.0
    %797 = vmatprep.subr.mxu0 0.0
    %798 = vmatpush1.msra.mxu0 0.0
    %799 = vmatprep.subr.mxu0 0.0
    %800 = vmatpush1.msra.mxu0 0.0
    %801 = vmatprep.subr.mxu0 0.0
    %802 = vmatpush1.msra.mxu0 0.0
    %803 = vmatprep.subr.mxu0 0.0
    %804 = vmatpush1.msra.mxu0 0.0
    %805 = vmatprep.subr.mxu0 0.0
    %806 = vmatpush1.msra.mxu0 0.0
    %807 = vmatprep.subr.mxu0 0.0
    %808 = vmatpush1.msra.mxu0 0.0
    %809 = vmatprep.subr.mxu0 0.0
    %810 = vmatpush1.msra.mxu0 0.0
    %811 = vmatprep.subr.mxu0 0.0
    %812 = vmatpush1.msra.mxu0 0.0
    %813 = vmatprep.subr.mxu0 0.0
    %814 = vmatpush1.msra.mxu0 0.0
    %815 = vmatprep.subr.mxu0 0.0
    %816 = vmatpush1.msra.mxu0 0.0
    %817 = vmatprep.subr.mxu0 0.0
    %818 = vmatpush1.msra.mxu0 0.0
    %819 = vmatprep.subr.mxu0 0.0
    %820 = vmatpush1.msra.mxu0 0.0
    %821 = vmatprep.subr.mxu0 0.0
    %822 = vmatpush1.msra.mxu0 0.0
    %823 = vmatprep.subr.mxu0 0.0
    %824 = vmatpush1.msra.mxu0 0.0
    %825 = vmatprep.subr.mxu0 0.0
    %826 = vmatpush1.msra.mxu0 0.0
    %827 = vmatprep.subr.mxu0 0.0
    %828 = vmatpush1.msra.mxu0 0.0
    %829 = vmatprep.subr.mxu0 0.0
    %830 = vmatpush1.msra.mxu0 0.0
    %831 = vmatprep.subr.mxu0 0.0
    %832 = vmatpush1.msra.mxu0 0.0
    %833 = vmatprep.subr.mxu0 0.0
    %834 = vmatpush1.msra.mxu0 0.0
    %835 = vmatprep.subr.mxu0 0.0
    %836 = vmatpush1.msra.mxu0 0.0
    %837 = vmatprep.subr.mxu0 0.0
    %838 = vmatpush1.msra.mxu0 0.0
    %839 = vmatprep.subr.mxu0 0.0
    %840 = vmatpush1.msra.mxu0 0.0
    %841 = vmatprep.mubr.f32.mxu0 0.0
    %842 = vmatmul.mubr.f32.gmra.mrb[0].mxu0 %v772
    %v843 = vpop.f32.mrb[0].mxu0
    %v844 = vadd.f32 0.0, %v843
    %v845 = vpop.f32.mrb[0].mxu0
    %846 = vmatprep.mubr.f32.mxu0 0.0
    %847 = vmatmul.mubr.f32.gmra.mrb[0].mxu0 %v775
    %v848 = vpop.f32.mrb[0].mxu0
    %v849 = vadd.f32 0.0, %v848
    %v850 = vpop.f32.mrb[0].mxu0
    %851 = vdwg.mxu0
    %v852 = vrcp.pop %v844
    %v853 = vrcp.pop %v849
    %v854 = vmul.f32 %v760, %v852
    %v855 = vmul.f32 %v762, %v853
    %v856 = vld [vmem:[#allocation7] sm:$0xff]
    %v857 = vld [vmem:[#allocation7 + $0x8] sm:$0xff]
    %v858 = vld [vmem:[#allocation7 + $0x10] sm:$0xff]
    %v859 = vld [vmem:[#allocation7 + $0x18] sm:$0xff]
    %v860 = vld [vmem:[#allocation7 + $0x20] sm:$0xff]
    %v861 = vld [vmem:[#allocation7 + $0x28] sm:$0xff]
    %v862 = vld [vmem:[#allocation7 + $0x30] sm:$0xff]
    %v863 = vld [vmem:[#allocation7 + $0x38] sm:$0xff]
    %v864 = vmul.f32 %v391, %v856
    %v865 = vmul.f32 %v394, %v857
    %v866 = vmul.f32 %v391, %v858
    %v867 = vmul.f32 %v394, %v859
    %v868 = vmul.f32 %v391, %v860
    %v869 = vmul.f32 %v394, %v861
    %v870 = vmul.f32 %v391, %v862
    %v871 = vmul.f32 %v394, %v863
    %v872 = vpack.c.bf16 %v855, %v854
    %v873 = vpack.c.bf16 %v865, %v864
    %v874 = vpack.c.bf16 %v867, %v866
    %v875 = vpack.c.bf16 %v869, %v868
    %v876 = vpack.c.bf16 %v871, %v870
    %v878 = vsel %vm750, %v872, 0
    %880 = vmatprep.subr.bf16.mxu0 0
    %881 = vmatpush1.bf16.msra.mxu0 %v873
    %882 = vmatprep.subr.bf16.mxu0 0
    %883 = vmatpush1.bf16.msra.mxu0 %v874
    %884 = vmatprep.subr.bf16.mxu0 0
    %885 = vmatpush1.bf16.msra.mxu0 %v875
    %886 = vmatprep.subr.bf16.mxu0 0
    %887 = vmatpush1.bf16.msra.mxu0 %v876
    %888 = vmatprep.subr.bf16.mxu0 0
    %889 = vmatpush1.bf16.msra.mxu0 0
    %890 = vmatprep.subr.bf16.mxu0 0
    %891 = vmatpush1.bf16.msra.mxu0 0
    %892 = vmatprep.subr.bf16.mxu0 0
    %893 = vmatpush1.bf16.msra.mxu0 0
    %894 = vmatprep.subr.bf16.mxu0 0
    %895 = vmatpush1.bf16.msra.mxu0 0
    %896 = vmatprep.subr.bf16.mxu0 0
    %897 = vmatpush1.bf16.msra.mxu0 0
    %898 = vmatprep.subr.bf16.mxu0 0
    %899 = vmatpush1.bf16.msra.mxu0 0
    %900 = vmatprep.subr.bf16.mxu0 0
    %901 = vmatpush1.bf16.msra.mxu0 0
    %902 = vmatprep.subr.bf16.mxu0 0
    %903 = vmatpush1.bf16.msra.mxu0 0
    %904 = vmatprep.subr.bf16.mxu0 0
    %905 = vmatpush1.bf16.msra.mxu0 0
    %906 = vmatprep.subr.bf16.mxu0 0
    %907 = vmatpush1.bf16.msra.mxu0 0
    %908 = vmatprep.subr.bf16.mxu0 0
    %909 = vmatpush1.bf16.msra.mxu0 0
    %910 = vmatprep.subr.bf16.mxu0 0
    %911 = vmatpush1.bf16.msra.mxu0 0
    %912 = vmatprep.mubr.bf16.mxu0 0
    %913 = vmatmul.mubr.bf16.gmra.mrb[0].mxu0 %v878
    %v914 = vpop.f32.mrb[0].mxu0
    %v915 = vadd.f32 0.0, %v914
    %v916 = vpop.f32.mrb[0].mxu0
    %v917 = vpop.f32.mrb[0].mxu0
    %v918 = vadd.f32 0.0, %v917
    %v919 = vpop.f32.mrb[0].mxu0
    %920 = vdwg.mxu0
    %v921 = vpack.c.bf16 %v918, %v915
    %v922 = vld [vmem:[%s4] sm:$0xf]
    %v923 = vld [vmem:[%s4 + $0x4] sm:$0xf]
    %v924 = vld [vmem:[%s4 + $0x8] sm:$0xf]
    %v925 = vld [vmem:[%s4 + $0xc] sm:$0xf]
    %v926 = vld [vmem:[%s4 + $0x10] sm:$0xf]
    %v927 = vld [vmem:[%s4 + $0x14] sm:$0xf]
    %v928 = vld [vmem:[%s4 + $0x18] sm:$0xf]
    %v929 = vld [vmem:[%s4 + $0x1c] sm:$0xf]
    %v930 = vld [vmem:[%s4 + $0x20] sm:$0xf]
    %v931 = vld [vmem:[%s4 + $0x24] sm:$0xf]
    %v932 = vld [vmem:[%s4 + $0x28] sm:$0xf]
    %v933 = vld [vmem:[%s4 + $0x2c] sm:$0xf]
    %v934 = vld [vmem:[%s4 + $0x30] sm:$0xf]
    %v935 = vld [vmem:[%s4 + $0x34] sm:$0xf]
    %v936 = vld [vmem:[%s4 + $0x38] sm:$0xf]
    %v937 = vld [vmem:[%s4 + $0x3c] sm:$0xf]
    %v954 = vunpack.c.l.b16 %v922
    %v955 = vunpack.c.l.b16 %v923
    %v956 = vunpack.c.l.b16 %v924
    %v957 = vunpack.c.l.b16 %v925
    %v958 = vunpack.c.l.b16 %v926
    %v959 = vunpack.c.l.b16 %v927
    %v960 = vunpack.c.l.b16 %v928
    %v961 = vunpack.c.l.b16 %v929
    %v962 = vunpack.c.l.b16 %v930
    %v963 = vunpack.c.l.b16 %v931
    %v964 = vunpack.c.l.b16 %v932
    %v965 = vunpack.c.l.b16 %v933
    %v966 = vunpack.c.l.b16 %v934
    %v967 = vunpack.c.l.b16 %v935
    %v968 = vunpack.c.l.b16 %v936
    %v969 = vunpack.c.l.b16 %v937
    %v970 = vpack.c.b16 %v955, %v954
    %v971 = vpack.c.b16 %v957, %v956
    %v972 = vpack.c.b16 %v959, %v958
    %v973 = vpack.c.b16 %v961, %v960
    %v974 = vpack.c.b16 %v963, %v962
    %v975 = vpack.c.b16 %v965, %v964
    %v976 = vpack.c.b16 %v967, %v966
    %v977 = vpack.c.b16 %v969, %v968
    %986 = vmatprep.subr.bf16.mxu0 0
    %987 = vmatpush1.bf16.msra.mxu0 %v970
    %988 = vmatprep.subr.bf16.mxu0 0
    %989 = vmatpush1.bf16.msra.mxu0 %v971
    %990 = vmatprep.subr.bf16.mxu0 0
    %991 = vmatpush1.bf16.msra.mxu0 %v972
    %992 = vmatprep.subr.bf16.mxu0 0
    %993 = vmatpush1.bf16.msra.mxu0 %v973
    %994 = vmatprep.subr.bf16.mxu0 0
    %995 = vmatpush1.bf16.msra.mxu0 %v974
    %996 = vmatprep.subr.bf16.mxu0 0
    %997 = vmatpush1.bf16.msra.mxu0 %v975
    %998 = vmatprep.subr.bf16.mxu0 0
    %999 = vmatpush1.bf16.msra.mxu0 %v976
    %1000 = vmatprep.subr.bf16.mxu0 0
    %1001 = vmatpush1.bf16.msra.mxu0 %v977
    %1002 = vmatprep.subr.bf16.mxu0 0
    %1003 = vmatpush1.bf16.msra.mxu0 0
    %1004 = vmatprep.subr.bf16.mxu0 0
    %1005 = vmatpush1.bf16.msra.mxu0 0
    %1006 = vmatprep.subr.bf16.mxu0 0
    %1007 = vmatpush1.bf16.msra.mxu0 0
    %1008 = vmatprep.subr.bf16.mxu0 0
    %1009 = vmatpush1.bf16.msra.mxu0 0
    %1010 = vmatprep.subr.bf16.mxu0 0
    %1011 = vmatpush1.bf16.msra.mxu0 0
    %1012 = vmatprep.subr.bf16.mxu0 0
    %1013 = vmatpush1.bf16.msra.mxu0 0
    %1014 = vmatprep.subr.bf16.mxu0 0
    %1015 = vmatpush1.bf16.msra.mxu0 0
    %1016 = vmatprep.subr.bf16.mxu0 0
    %1017 = vmatpush1.bf16.msra.mxu0 0
    %1018 = vmatprep.mubr.bf16.mxu0 0
    %1019 = vmatmul.mubr.bf16.gmra.mrb[0].mxu0 %v921
    %v1020 = vpop.f32.mrb[0].mxu0
    %v1021 = vadd.f32 0.0, %v1020
    %v1022 = vpop.f32.mrb[0].mxu0
    %v1023 = vpop.f32.mrb[0].mxu0
    %v1024 = vadd.f32 0.0, %v1023
    %v1025 = vpop.f32.mrb[0].mxu0
    %1026 = vdwg.mxu0
    %v1027 = vadd.f32 %v127, %v1021
    %v1028 = vadd.f32 %v128, %v1024
    %v1029 = vmul.f32 %v1027, %v1027
    %v1030 = vmul.f32 %v1028, %v1028
    %1031 = vadd.xlane.f32.xlu0 %v1029
    %v1032 = vpop.xlane.xlu0 %1031
    %1033 = vadd.xlane.f32.xlu0 %v1030
    %v1034 = vpop.xlane.xlu0 %1033
    %v1035 = vmul.f32 %v1032, 0.03125
    %v1036 = vmul.f32 %v1034, 0.03125
    %v1037 = vadd.f32 %v1035, 1e-06
    %v1038 = vadd.f32 %v1036, 1e-06
    %v1039 = vrsqrt.pop %v1037
    %v1040 = vrsqrt.pop %v1038
    %v1041 = vmul.f32 %v1027, %v1039
    %v1042 = vmul.f32 %v1028, %v1040
    %v1043 = vld [vmem:[%s8] sm:$0x1]
    %v1045 = vlaneseq
    %v1046 = vshrl.u32 %v1045, 7
    %v1047 = vsub.s32 0, %v1046
    %v1048 = vrot.slane %v1043, %v1047
    %v1050 = vmul.f32 %v1041, %v1048
    %v1051 = vmul.f32 %v1042, %v1048
    %v1052 = vpack.c.bf16 %v1051, %v1050
    %v1053 = vld [vmem:[#allocation4] sm:$0xf]
    %v1054 = vld [vmem:[#allocation4 + $0x4] sm:$0xf]
    %v1055 = vld [vmem:[#allocation4 + $0x8] sm:$0xf]
    %v1056 = vld [vmem:[#allocation4 + $0xc] sm:$0xf]
    %v1057 = vld [vmem:[#allocation4 + $0x10] sm:$0xf]
    %v1058 = vld [vmem:[#allocation4 + $0x14] sm:$0xf]
    %v1059 = vld [vmem:[#allocation4 + $0x18] sm:$0xf]
    %v1060 = vld [vmem:[#allocation4 + $0x1c] sm:$0xf]
    %v1061 = vld [vmem:[#allocation4 + $0x20] sm:$0xf]
    %v1062 = vld [vmem:[#allocation4 + $0x24] sm:$0xf]
    %v1063 = vld [vmem:[#allocation4 + $0x28] sm:$0xf]
    %v1064 = vld [vmem:[#allocation4 + $0x2c] sm:$0xf]
    %v1065 = vld [vmem:[#allocation4 + $0x30] sm:$0xf]
    %v1066 = vld [vmem:[#allocation4 + $0x34] sm:$0xf]
    %v1067 = vld [vmem:[#allocation4 + $0x38] sm:$0xf]
    %v1068 = vld [vmem:[#allocation4 + $0x3c] sm:$0xf]
    %v1085 = vunpack.c.l.b16 %v1053
    %v1086 = vunpack.c.l.b16 %v1054
    %v1087 = vunpack.c.l.b16 %v1055
    %v1088 = vunpack.c.l.b16 %v1056
    %v1089 = vunpack.c.l.b16 %v1057
    %v1090 = vunpack.c.l.b16 %v1058
    %v1091 = vunpack.c.l.b16 %v1059
    %v1092 = vunpack.c.l.b16 %v1060
    %v1093 = vunpack.c.l.b16 %v1061
    %v1094 = vunpack.c.l.b16 %v1062
    %v1095 = vunpack.c.l.b16 %v1063
    %v1096 = vunpack.c.l.b16 %v1064
    %v1097 = vunpack.c.l.b16 %v1065
    %v1098 = vunpack.c.l.b16 %v1066
    %v1099 = vunpack.c.l.b16 %v1067
    %v1100 = vunpack.c.l.b16 %v1068
    %v1101 = vpack.c.b16 %v1086, %v1085
    %v1102 = vpack.c.b16 %v1088, %v1087
    %v1103 = vpack.c.b16 %v1090, %v1089
    %v1104 = vpack.c.b16 %v1092, %v1091
    %v1105 = vpack.c.b16 %v1094, %v1093
    %v1106 = vpack.c.b16 %v1096, %v1095
    %v1107 = vpack.c.b16 %v1098, %v1097
    %v1108 = vpack.c.b16 %v1100, %v1099
    %1117 = vmatprep.subr.bf16.mxu0 0
    %1118 = vmatpush1.bf16.msra.mxu0 %v1101
    %1119 = vmatprep.subr.bf16.mxu0 0
    %1120 = vmatpush1.bf16.msra.mxu0 %v1102
    %1121 = vmatprep.subr.bf16.mxu0 0
    %1122 = vmatpush1.bf16.msra.mxu0 %v1103
    %1123 = vmatprep.subr.bf16.mxu0 0
    %1124 = vmatpush1.bf16.msra.mxu0 %v1104
    %1125 = vmatprep.subr.bf16.mxu0 0
    %1126 = vmatpush1.bf16.msra.mxu0 %v1105
    %1127 = vmatprep.subr.bf16.mxu0 0
    %1128 = vmatpush1.bf16.msra.mxu0 %v1106
    %1129 = vmatprep.subr.bf16.mxu0 0
    %1130 = vmatpush1.bf16.msra.mxu0 %v1107
    %1131 = vmatprep.subr.bf16.mxu0 0
    %1132 = vmatpush1.bf16.msra.mxu0 %v1108
    %1133 = vmatprep.subr.bf16.mxu0 0
    %1134 = vmatpush1.bf16.msra.mxu0 0
    %1135 = vmatprep.subr.bf16.mxu0 0
    %1136 = vmatpush1.bf16.msra.mxu0 0
    %1137 = vmatprep.subr.bf16.mxu0 0
    %1138 = vmatpush1.bf16.msra.mxu0 0
    %1139 = vmatprep.subr.bf16.mxu0 0
    %1140 = vmatpush1.bf16.msra.mxu0 0
    %1141 = vmatprep.subr.bf16.mxu0 0
    %1142 = vmatpush1.bf16.msra.mxu0 0
    %1143 = vmatprep.subr.bf16.mxu0 0
    %1144 = vmatpush1.bf16.msra.mxu0 0
    %1145 = vmatprep.subr.bf16.mxu0 0
    %1146 = vmatpush1.bf16.msra.mxu0 0
    %1147 = vmatprep.subr.bf16.mxu0 0
    %1148 = vmatpush1.bf16.msra.mxu0 0
    %1149 = vmatprep.mubr.bf16.mxu0 0
    %1150 = vmatmul.mubr.bf16.gmra.mrb[0].mxu0 %v1052
    %v1151 = vpop.f32.mrb[0].mxu0
    %v1152 = vadd.f32 0.0, %v1151
    %v1153 = vpop.f32.mrb[0].mxu0
    %v1154 = vpop.f32.mrb[0].mxu0
    %v1155 = vadd.f32 0.0, %v1154
    %v1156 = vpop.f32.mrb[0].mxu0
    %1157 = vdwg.mxu0
    %v1158 = vmul.f32 %v1152, 0.5
    %v1159 = vmul.f32 %v1155, 0.5
    %v1160 = vtanh.pop %v1158
    %v1161 = vtanh.pop %v1159
    %v1162 = vmul.f32 %v1160, 0.5
    %v1163 = vmul.f32 %v1161, 0.5
    %v1164 = vadd.f32 %v1162, 0.5
    %v1165 = vadd.f32 %v1163, 0.5
    %v1166 = vmul.f32 %v1152, %v1164
    %v1167 = vmul.f32 %v1155, %v1165
    %1168 = vrot.lane.b32.xlu0 %v1152, 64
    %v1169 = vpop.permute.xlu0 %1168
    %1170 = vrot.lane.b32.xlu0 %v1155, 64
    %v1171 = vpop.permute.xlu0 %1170
    %v1172 = vmul.f32 %v1166, %v1169
    %v1173 = vmul.f32 %v1167, %v1171
    %v1174 = vpack.c.bf16 %v1173, %v1172
    %v1175 = vld [vmem:[#allocation6] sm:$0xf]
    %v1176 = vld [vmem:[#allocation6 + $0x4] sm:$0xf]
    %v1177 = vld [vmem:[#allocation6 + $0x8] sm:$0xf]
    %v1178 = vld [vmem:[#allocation6 + $0xc] sm:$0xf]
    %v1179 = vld [vmem:[#allocation6 + $0x10] sm:$0xf]
    %v1180 = vld [vmem:[#allocation6 + $0x14] sm:$0xf]
    %v1181 = vld [vmem:[#allocation6 + $0x18] sm:$0xf]
    %v1182 = vld [vmem:[#allocation6 + $0x1c] sm:$0xf]
    %v1183 = vld [vmem:[#allocation6 + $0x20] sm:$0xf]
    %v1184 = vld [vmem:[#allocation6 + $0x24] sm:$0xf]
    %v1185 = vld [vmem:[#allocation6 + $0x28] sm:$0xf]
    %v1186 = vld [vmem:[#allocation6 + $0x2c] sm:$0xf]
    %v1187 = vld [vmem:[#allocation6 + $0x30] sm:$0xf]
    %v1188 = vld [vmem:[#allocation6 + $0x34] sm:$0xf]
    %v1189 = vld [vmem:[#allocation6 + $0x38] sm:$0xf]
    %v1190 = vld [vmem:[#allocation6 + $0x3c] sm:$0xf]
    %v1207 = vunpack.c.l.b16 %v1175
    %v1208 = vunpack.c.l.b16 %v1176
    %v1209 = vunpack.c.l.b16 %v1177
    %v1210 = vunpack.c.l.b16 %v1178
    %v1211 = vunpack.c.l.b16 %v1179
    %v1212 = vunpack.c.l.b16 %v1180
    %v1213 = vunpack.c.l.b16 %v1181
    %v1214 = vunpack.c.l.b16 %v1182
    %v1215 = vunpack.c.l.b16 %v1183
    %v1216 = vunpack.c.l.b16 %v1184
    %v1217 = vunpack.c.l.b16 %v1185
    %v1218 = vunpack.c.l.b16 %v1186
    %v1219 = vunpack.c.l.b16 %v1187
    %v1220 = vunpack.c.l.b16 %v1188
    %v1221 = vunpack.c.l.b16 %v1189
    %v1222 = vunpack.c.l.b16 %v1190
    %v1223 = vpack.c.b16 %v1208, %v1207
    %v1224 = vpack.c.b16 %v1210, %v1209
    %v1225 = vpack.c.b16 %v1212, %v1211
    %v1226 = vpack.c.b16 %v1214, %v1213
    %v1227 = vpack.c.b16 %v1216, %v1215
    %v1228 = vpack.c.b16 %v1218, %v1217
    %v1229 = vpack.c.b16 %v1220, %v1219
    %v1230 = vpack.c.b16 %v1222, %v1221
    %1239 = vmatprep.subr.bf16.mxu0 0
    %1240 = vmatpush1.bf16.msra.mxu0 %v1223
    %1241 = vmatprep.subr.bf16.mxu0 0
    %1242 = vmatpush1.bf16.msra.mxu0 %v1224
    %1243 = vmatprep.subr.bf16.mxu0 0
    %1244 = vmatpush1.bf16.msra.mxu0 %v1225
    %1245 = vmatprep.subr.bf16.mxu0 0
    %1246 = vmatpush1.bf16.msra.mxu0 %v1226
    %1247 = vmatprep.subr.bf16.mxu0 0
    %1248 = vmatpush1.bf16.msra.mxu0 %v1227
    %1249 = vmatprep.subr.bf16.mxu0 0
    %1250 = vmatpush1.bf16.msra.mxu0 %v1228
    %1251 = vmatprep.subr.bf16.mxu0 0
    %1252 = vmatpush1.bf16.msra.mxu0 %v1229
    %1253 = vmatprep.subr.bf16.mxu0 0
    %1254 = vmatpush1.bf16.msra.mxu0 %v1230
    %1255 = vmatprep.subr.bf16.mxu0 0
    %1256 = vmatpush1.bf16.msra.mxu0 0
    %1257 = vmatprep.subr.bf16.mxu0 0
    %1258 = vmatpush1.bf16.msra.mxu0 0
    %1259 = vmatprep.subr.bf16.mxu0 0
    %1260 = vmatpush1.bf16.msra.mxu0 0
    %1261 = vmatprep.subr.bf16.mxu0 0
    %1262 = vmatpush1.bf16.msra.mxu0 0
    %1263 = vmatprep.subr.bf16.mxu0 0
    %1264 = vmatpush1.bf16.msra.mxu0 0
    %1265 = vmatprep.subr.bf16.mxu0 0
    %1266 = vmatpush1.bf16.msra.mxu0 0
    %1267 = vmatprep.subr.bf16.mxu0 0
    %1268 = vmatpush1.bf16.msra.mxu0 0
    %1269 = vmatprep.subr.bf16.mxu0 0
    %1270 = vmatpush1.bf16.msra.mxu0 0
    %1271 = vmatprep.mubr.bf16.mxu0 0
    %1272 = vmatmul.mubr.bf16.gmra.mrb[0].mxu0 %v1174
    %v1273 = vpop.f32.mrb[0].mxu0
    %v1274 = vadd.f32 0.0, %v1273
    %v1275 = vpop.f32.mrb[0].mxu0
    %v1276 = vpop.f32.mrb[0].mxu0
    %v1277 = vadd.f32 0.0, %v1276
    %v1278 = vpop.f32.mrb[0].mxu0
    %1279 = vdwg.mxu0
    %v1280 = vadd.f32 %v1027, %v1274
    %v1281 = vadd.f32 %v1028, %v1277
    %1282 = vst [vmem:[%s13] sm:$0xff] %v1280
    %1283 = vst [vmem:[%s13 + $0x8] sm:$0xff] %v1281
    // Predicated region
    $region78: #{llama_decoder_layer.1} parent=1 // pred_check
      _
    $region79: #{llama_decoder_layer.1} parent=1 // pred_check_branch
      %1285 = sbr.rel (0) target = $region81
    $region80: #{llama_decoder_layer.1} parent=1 // pred_region
      _
    $region81: #{llama_decoder_layer.1} parent=1 // pred_fallthru
      _
    // Predicated region
    $region82: #{llama_decoder_layer.1} parent=1 // pred_check
      _
    $region83: #{llama_decoder_layer.1} parent=1 // pred_check_branch
      %1287 = sbr.rel (0) target = $region85
    $region84: #{llama_decoder_layer.1} parent=1 // pred_region
      _
    $region85: #{llama_decoder_layer.1} parent=1 // pred_fallthru
      _
    %1288 = vsyncpa [#allocation3], 1
    %1289 = vsyncpa [#allocation5], 1
    %1290 = vsyncpa [#allocation8], 1
    %1291 = vsyncpa [#allocation11], 1

</llo_original>
